<compile_context>
chip_gen: v7x
topology: tpu7x:2x2x1
jax: 0.10.0
libtpu: 0.0.40
codegen_flags: <defaults>
</compile_context>

<pallas_src>
import jax
import jax.numpy as jnp
from jax import lax
from jax.experimental import pallas as pl
from jax.experimental.pallas import tpu as pltpu

_SUBLANE = 8  # f32 sublane multiple: batch is padded to this


def _att_reservoir_kernel(ids_ref, tbl_ref, wres_ref,
                          w1_ref, b1_ref, w2_ref, b2_ref,
                          ws_ref, bc_ref, out_ref):
    """Fused gather + reservoir recurrence + dynamic-attention head + classifier.

    ids_ref: (T*B, 1) int32  token ids, time-major then batch
    tbl_ref: (vocab, R)      pre-projected embedding table (embedding @ W_in)
    out_ref: (B, V)          logits
    """
    B = out_ref.shape[0]
    TB = ids_ref.shape[0]
    T = TB // B
    vocab, R = tbl_ref.shape
    H = w1_ref.shape[1]

    # --- reservoir extractor ---
    # TODO(synk): _ReservoirExtractor source was not provided; assumed embedding
    # lookup + r_t = tanh(e_t @ W_in + r_{t-1} @ W_res), returning final r_T.
    #
    # Fused embedding gather + hoisted input projection: one-hot(ids) against
    # the pre-projected (vocab, R) table -> u[t*B+b] = (embedding @ W_in)[id].
    ids = ids_ref[...]                                           # (T*B, 1) int32
    iota = lax.broadcasted_iota(jnp.int32, (TB, vocab), 1)
    onehot = jnp.where(iota == ids, 1.0, 0.0).astype(jnp.float32)  # (T*B, vocab)
    u = jnp.dot(onehot, tbl_ref[...],
                preferred_element_type=jnp.float32)              # (T*B, R)

    # Serial recurrence; T is small & static -> fully unrolled so the LLO
    # scheduler can overlap the independent parts of adjacent iterations.
    # (Possible micro-opt: keep W_res resident via pltpu.matmul_push_rhs /
    #  matmul_acc_lhs if the Mosaic dump shows the RHS re-pushed every step.)
    wres = wres_ref[...]
    r = jnp.zeros((B, R), jnp.float32)
    for t in range(T):
        u_t = u[t * B:(t + 1) * B, :]                            # aligned static slice
        r = jnp.tanh(u_t + jnp.dot(r, wres,
                                   preferred_element_type=jnp.float32))

    # --- _DynAttentionHead ---
    # h = ReLU(r @ W1 + b1)
    h = jnp.maximum(
        jnp.dot(r, w1_ref[...], preferred_element_type=jnp.float32) + b1_ref[...],
        0.0)                                                     # (B, H)
    # g[b, h*R + j] == W.view(B, H, R)[b, h, j]
    g = (jnp.dot(h, w2_ref[...], preferred_element_type=jnp.float32)
         + b2_ref[...])                                          # (B, H*R)
    # r replicated once per h-block (pure lane replication, no selector matmul)
    r_rep = jnp.tile(r, (1, H))                                  # (B, H*R)
    # out[b, h] = sum_j g[b, h*R + j] * r[b, j]; classifier folded into
    # ws[h*R + j, v] = wc[h, v]  =>  logits = (g * r_rep) @ ws + bc
    logits = (jnp.dot(g * r_rep, ws_ref[...],
                      preferred_element_type=jnp.float32)
              + bc_ref[...])                                     # (B, V)
    out_ref[...] = logits.astype(out_ref.dtype)


def prepare_params(params):
    """One-time (per-weight-update) parameter preparation.

    Folds the fixed extractor input projection into the embedding table and the
    block-sum selector into the classifier weight, so neither costs anything
    per forward call.
    """
    R = params["w_res"].shape[0]
    return {
        "table_u": params["embedding"] @ params["w_in"],         # (vocab, R)
        "w_res": params["w_res"],
        "w1": params["w1"], "b1": params["b1"],
        "w2": params["w2"], "b2": params["b2"],
        "ws": jnp.repeat(params["wc"], R, axis=0),               # (H*R, V)
        "bc": params["bc"],
    }


def att_reservoir_net(x_tokens, prep):
    """x_tokens: (B, T) int32 token ids -> logits (B, vocab_size) float32."""
    B, T = x_tokens.shape
    vocab, R = prep["table_u"].shape
    H = prep["w1"].shape[1]
    V = prep["bc"].shape[1]

    # Pad batch to a full f32 sublane; padded rows read id 0 and are sliced off.
    B_pad = ((B + _SUBLANE - 1) // _SUBLANE) * _SUBLANE
    ids = jnp.pad(x_tokens, ((0, B_pad - B), (0, 0))).T.reshape(T * B_pad, 1)

    flops = (2 * T * B_pad * (vocab * R + R * R)
             + 2 * B_pad * (R * H + H * H * R + H * R * V))
    bytes_accessed = (ids.size * 4
                      + sum(int(a.size) * 4 for a in prep.values())
                      + B_pad * V * 4)
    cost = pl.CostEstimate(flops=flops,
                           transcendentals=T * B_pad * R,
                           bytes_accessed=bytes_accessed)

    # Everything fits VMEM many times over (<0.5 MiB total) -> no grid, whole
    # arrays resident.  (Scaling note: if H/R/V grow, tile w2/ws over H*R with
    # an "arbitrary" reduction axis and set vmem_limit_bytes; if batch grows,
    # add a "parallel" batch grid axis so v7x's second TensorCore is used.)
    vmem = pl.BlockSpec(memory_space=pltpu.MemorySpace.VMEM)
    logits = pl.pallas_call(
        _att_reservoir_kernel,
        out_shape=jax.ShapeDtypeStruct((B_pad, V), jnp.float32),
        in_specs=[vmem] * 9,
        out_specs=vmem,
        cost_estimate=cost,
    )(ids, prep["table_u"], prep["w_res"],
      prep["w1"], prep["b1"], prep["w2"], prep["b2"],
      prep["ws"], prep["bc"])
    return logits[:B]


def _reference(x_tokens, params):
    """Pure-JAX reference mirroring the PyTorch forward semantics."""
    emb = jnp.take(params["embedding"], x_tokens, axis=0)        # (B, T, E)
    B, T, _ = emb.shape
    H = params["w1"].shape[1]
    R = params["w_res"].shape[0]
    r = jnp.zeros((B, R), jnp.float32)
    for t in range(T):
        r = jnp.tanh(emb[:, t, :] @ params["w_in"] + r @ params["w_res"])
    h = jax.nn.relu(r @ params["w1"] + params["b1"])
    W = (h @ params["w2"] + params["b2"]).reshape(B, H, R)       # == .view(B, H, R)
    out = jnp.einsum("bhr,br->bh", W, r)                         # (W @ r[..., None]).squeeze(-1)
    return out @ params["wc"] + params["bc"]


if __name__ == "__main__":
    vocab_size, embed_size, reservoir_size, hidden_size = 16, 16, 32, 32
    B, T = 2, 8

    key = jax.random.PRNGKey(0)
    k = jax.random.split(key, 10)

    def lin(kk, fan_in, shape):
        return jax.random.normal(kk, shape, jnp.float32) / jnp.sqrt(fan_in)

    params = {
        "embedding": jax.random.normal(k[0], (vocab_size, embed_size), jnp.float32),
        # reservoir extractor (fixed / untrained weights)
        "w_in": lin(k[1], embed_size, (embed_size, reservoir_size)),
        "w_res": lin(k[2], reservoir_size, (reservoir_size, reservoir_size)) * 0.9,
        # _DynAttentionHead.generate: Linear(R->H), ReLU, Linear(H->H*R)
        "w1": lin(k[3], reservoir_size, (reservoir_size, hidden_size)),
        "b1": lin(k[4], reservoir_size, (1, hidden_size)),
        "w2": lin(k[5], hidden_size, (hidden_size, hidden_size * reservoir_size)),
        "b2": lin(k[6], hidden_size, (1, hidden_size * reservoir_size)),
        # _DynAttentionHead.classifier: Linear(H->V)
        "wc": lin(k[7], hidden_size, (hidden_size, vocab_size)),
        "bc": lin(k[8], hidden_size, (1, vocab_size)),
    }

    x = jax.random.randint(k[9], (B, T), 0, vocab_size, dtype=jnp.int32)

    prep = prepare_params(params)                 # one-time parameter folding
    logits = jax.block_until_ready(att_reservoir_net(x, prep))
    ref = _reference(x, params)

    assert logits.shape == (B, vocab_size), logits.shape
    assert jnp.allclose(logits, ref, atol=1e-3, rtol=1e-3), (
        float(jnp.max(jnp.abs(logits - ref))))
    print("KERNEL_OK")
</pallas_src>

<mosaic_0001>
module attributes {stable_mosaic.version = 11 : i64} {
  func.func @_att_reservoir_kernel(%arg0: memref<64x1xi32, #tpu.memory_space<vmem>>, %arg1: memref<16x32xf32, #tpu.memory_space<vmem>>, %arg2: memref<32x32xf32, #tpu.memory_space<vmem>>, %arg3: memref<32x32xf32, #tpu.memory_space<vmem>>, %arg4: memref<1x32xf32, #tpu.memory_space<vmem>>, %arg5: memref<32x1024xf32, #tpu.memory_space<vmem>>, %arg6: memref<1x1024xf32, #tpu.memory_space<vmem>>, %arg7: memref<1024x16xf32, #tpu.memory_space<vmem>>, %arg8: memref<1x16xf32, #tpu.memory_space<vmem>>, %arg9: memref<8x16xf32, #tpu.memory_space<vmem>>) attributes {dimension_semantics = [], scalar_prefetch = 0 : i64, scratch_operands = 0 : i64, tpu.core_type = #tpu.core_type<tc>} {
    %c0 = arith.constant 0 : index
    %c0_0 = arith.constant 0 : index
    %0 = vector.load %arg0[%c0, %c0_0] : memref<64x1xi32, #tpu.memory_space<vmem>>, vector<64x1xi32>
    %1 = tpu.iota {dimensions = array<i32: 1>} : vector<64x16xi32>
    %2 = vector.broadcast %0 : vector<64x1xi32> to vector<64x16xi32>
    %3 = arith.cmpi eq, %1, %2 : vector<64x16xi32>
    %cst = arith.constant 1.000000e+00 : f32
    %cst_1 = arith.constant 0.000000e+00 : f32
    %4 = vector.broadcast %cst : f32 to vector<64x16xf32>
    %5 = vector.broadcast %cst_1 : f32 to vector<64x16xf32>
    %6 = arith.select %3, %4, %5 : vector<64x16xi1>, vector<64x16xf32>
    %c0_2 = arith.constant 0 : index
    %c0_3 = arith.constant 0 : index
    %7 = vector.load %arg1[%c0_2, %c0_3] : memref<16x32xf32, #tpu.memory_space<vmem>>, vector<16x32xf32>
    %cst_4 = arith.constant dense<0.000000e+00> : vector<64x32xf32>
    %8 = tpu.matmul %6, %7, %cst_4 {dimension_numbers = #tpu.dot_dimension_numbers<[1], [0], [0], [1], [0, 0, 1, 1], [], []>} : vector<64x16xf32>, vector<16x32xf32>, vector<64x32xf32> -> vector<64x32xf32>
    %c0_5 = arith.constant 0 : index
    %c0_6 = arith.constant 0 : index
    %9 = vector.load %arg2[%c0_5, %c0_6] : memref<32x32xf32, #tpu.memory_space<vmem>>, vector<32x32xf32>
    %cst_7 = arith.constant 0.000000e+00 : f32
    %10 = vector.broadcast %cst_7 : f32 to vector<8x32xf32>
    %11 = vector.extract_strided_slice %8 {offsets = [0, 0], sizes = [8, 32], strides = [1, 1]} : vector<64x32xf32> to vector<8x32xf32>
    %cst_8 = arith.constant dense<0.000000e+00> : vector<8x32xf32>
    %12 = tpu.matmul %10, %9, %cst_8 {dimension_numbers = #tpu.dot_dimension_numbers<[1], [0], [0], [1], [0, 0, 1, 1], [], []>} : vector<8x32xf32>, vector<32x32xf32>, vector<8x32xf32> -> vector<8x32xf32>
    %13 = arith.addf %11, %12 : vector<8x32xf32>
    %14 = math.tanh %13 : vector<8x32xf32>
    %15 = vector.extract_strided_slice %8 {offsets = [8, 0], sizes = [8, 32], strides = [1, 1]} : vector<64x32xf32> to vector<8x32xf32>
    %cst_9 = arith.constant dense<0.000000e+00> : vector<8x32xf32>
    %16 = tpu.matmul %14, %9, %cst_9 {dimension_numbers = #tpu.dot_dimension_numbers<[1], [0], [0], [1], [0, 0, 1, 1], [], []>} : vector<8x32xf32>, vector<32x32xf32>, vector<8x32xf32> -> vector<8x32xf32>
    %17 = arith.addf %15, %16 : vector<8x32xf32>
    %18 = math.tanh %17 : vector<8x32xf32>
    %19 = vector.extract_strided_slice %8 {offsets = [16, 0], sizes = [8, 32], strides = [1, 1]} : vector<64x32xf32> to vector<8x32xf32>
    %cst_10 = arith.constant dense<0.000000e+00> : vector<8x32xf32>
    %20 = tpu.matmul %18, %9, %cst_10 {dimension_numbers = #tpu.dot_dimension_numbers<[1], [0], [0], [1], [0, 0, 1, 1], [], []>} : vector<8x32xf32>, vector<32x32xf32>, vector<8x32xf32> -> vector<8x32xf32>
    %21 = arith.addf %19, %20 : vector<8x32xf32>
    %22 = math.tanh %21 : vector<8x32xf32>
    %23 = vector.extract_strided_slice %8 {offsets = [24, 0], sizes = [8, 32], strides = [1, 1]} : vector<64x32xf32> to vector<8x32xf32>
    %cst_11 = arith.constant dense<0.000000e+00> : vector<8x32xf32>
    %24 = tpu.matmul %22, %9, %cst_11 {dimension_numbers = #tpu.dot_dimension_numbers<[1], [0], [0], [1], [0, 0, 1, 1], [], []>} : vector<8x32xf32>, vector<32x32xf32>, vector<8x32xf32> -> vector<8x32xf32>
    %25 = arith.addf %23, %24 : vector<8x32xf32>
    %26 = math.tanh %25 : vector<8x32xf32>
    %27 = vector.extract_strided_slice %8 {offsets = [32, 0], sizes = [8, 32], strides = [1, 1]} : vector<64x32xf32> to vector<8x32xf32>
    %cst_12 = arith.constant dense<0.000000e+00> : vector<8x32xf32>
    %28 = tpu.matmul %26, %9, %cst_12 {dimension_numbers = #tpu.dot_dimension_numbers<[1], [0], [0], [1], [0, 0, 1, 1], [], []>} : vector<8x32xf32>, vector<32x32xf32>, vector<8x32xf32> -> vector<8x32xf32>
    %29 = arith.addf %27, %28 : vector<8x32xf32>
    %30 = math.tanh %29 : vector<8x32xf32>
    %31 = vector.extract_strided_slice %8 {offsets = [40, 0], sizes = [8, 32], strides = [1, 1]} : vector<64x32xf32> to vector<8x32xf32>
    %cst_13 = arith.constant dense<0.000000e+00> : vector<8x32xf32>
    %32 = tpu.matmul %30, %9, %cst_13 {dimension_numbers = #tpu.dot_dimension_numbers<[1], [0], [0], [1], [0, 0, 1, 1], [], []>} : vector<8x32xf32>, vector<32x32xf32>, vector<8x32xf32> -> vector<8x32xf32>
    %33 = arith.addf %31, %32 : vector<8x32xf32>
    %34 = math.tanh %33 : vector<8x32xf32>
    %35 = vector.extract_strided_slice %8 {offsets = [48, 0], sizes = [8, 32], strides = [1, 1]} : vector<64x32xf32> to vector<8x32xf32>
    %cst_14 = arith.constant dense<0.000000e+00> : vector<8x32xf32>
    %36 = tpu.matmul %34, %9, %cst_14 {dimension_numbers = #tpu.dot_dimension_numbers<[1], [0], [0], [1], [0, 0, 1, 1], [], []>} : vector<8x32xf32>, vector<32x32xf32>, vector<8x32xf32> -> vector<8x32xf32>
    %37 = arith.addf %35, %36 : vector<8x32xf32>
    %38 = math.tanh %37 : vector<8x32xf32>
    %39 = vector.extract_strided_slice %8 {offsets = [56, 0], sizes = [8, 32], strides = [1, 1]} : vector<64x32xf32> to vector<8x32xf32>
    %cst_15 = arith.constant dense<0.000000e+00> : vector<8x32xf32>
    %40 = tpu.matmul %38, %9, %cst_15 {dimension_numbers = #tpu.dot_dimension_numbers<[1], [0], [0], [1], [0, 0, 1, 1], [], []>} : vector<8x32xf32>, vector<32x32xf32>, vector<8x32xf32> -> vector<8x32xf32>
    %41 = arith.addf %39, %40 : vector<8x32xf32>
    %42 = math.tanh %41 : vector<8x32xf32>
    %c0_16 = arith.constant 0 : index
    %c0_17 = arith.constant 0 : index
    %43 = vector.load %arg3[%c0_16, %c0_17] : memref<32x32xf32, #tpu.memory_space<vmem>>, vector<32x32xf32>
    %cst_18 = arith.constant dense<0.000000e+00> : vector<8x32xf32>
    %44 = tpu.matmul %42, %43, %cst_18 {dimension_numbers = #tpu.dot_dimension_numbers<[1], [0], [0], [1], [0, 0, 1, 1], [], []>} : vector<8x32xf32>, vector<32x32xf32>, vector<8x32xf32> -> vector<8x32xf32>
    %c0_19 = arith.constant 0 : index
    %c0_20 = arith.constant 0 : index
    %45 = vector.load %arg4[%c0_19, %c0_20] : memref<1x32xf32, #tpu.memory_space<vmem>>, vector<1x32xf32>
    %46 = vector.broadcast %45 : vector<1x32xf32> to vector<8x32xf32>
    %47 = arith.addf %44, %46 : vector<8x32xf32>
    %cst_21 = arith.constant 0.000000e+00 : f32
    %48 = vector.broadcast %cst_21 : f32 to vector<8x32xf32>
    %49 = arith.maximumf %47, %48 : vector<8x32xf32>
    %c0_22 = arith.constant 0 : index
    %c0_23 = arith.constant 0 : index
    %50 = vector.load %arg5[%c0_22, %c0_23] : memref<32x1024xf32, #tpu.memory_space<vmem>>, vector<32x1024xf32>
    %cst_24 = arith.constant dense<0.000000e+00> : vector<8x1024xf32>
    %51 = tpu.matmul %49, %50, %cst_24 {dimension_numbers = #tpu.dot_dimension_numbers<[1], [0], [0], [1], [0, 0, 1, 1], [], []>} : vector<8x32xf32>, vector<32x1024xf32>, vector<8x1024xf32> -> vector<8x1024xf32>
    %c0_25 = arith.constant 0 : index
    %c0_26 = arith.constant 0 : index
    %52 = vector.load %arg6[%c0_25, %c0_26] : memref<1x1024xf32, #tpu.memory_space<vmem>>, vector<1x1024xf32>
    %53 = vector.broadcast %52 : vector<1x1024xf32> to vector<8x1024xf32>
    %54 = arith.addf %51, %53 : vector<8x1024xf32>
    %55 = tpu.concatenate %42, %42, %42, %42, %42, %42, %42, %42, %42, %42, %42, %42, %42, %42, %42, %42, %42, %42, %42, %42, %42, %42, %42, %42, %42, %42, %42, %42, %42, %42, %42, %42 in 1 : vector<8x32xf32>, vector<8x32xf32>, vector<8x32xf32>, vector<8x32xf32>, vector<8x32xf32>, vector<8x32xf32>, vector<8x32xf32>, vector<8x32xf32>, vector<8x32xf32>, vector<8x32xf32>, vector<8x32xf32>, vector<8x32xf32>, vector<8x32xf32>, vector<8x32xf32>, vector<8x32xf32>, vector<8x32xf32>, vector<8x32xf32>, vector<8x32xf32>, vector<8x32xf32>, vector<8x32xf32>, vector<8x32xf32>, vector<8x32xf32>, vector<8x32xf32>, vector<8x32xf32>, vector<8x32xf32>, vector<8x32xf32>, vector<8x32xf32>, vector<8x32xf32>, vector<8x32xf32>, vector<8x32xf32>, vector<8x32xf32>, vector<8x32xf32> -> vector<8x1024xf32>
    %56 = arith.mulf %54, %55 : vector<8x1024xf32>
    %c0_27 = arith.constant 0 : index
    %c0_28 = arith.constant 0 : index
    %57 = vector.load %arg7[%c0_27, %c0_28] : memref<1024x16xf32, #tpu.memory_space<vmem>>, vector<1024x16xf32>
    %cst_29 = arith.constant dense<0.000000e+00> : vector<8x16xf32>
    %58 = tpu.matmul %56, %57, %cst_29 {dimension_numbers = #tpu.dot_dimension_numbers<[1], [0], [0], [1], [0, 0, 1, 1], [], []>} : vector<8x1024xf32>, vector<1024x16xf32>, vector<8x16xf32> -> vector<8x16xf32>
    %c0_30 = arith.constant 0 : index
    %c0_31 = arith.constant 0 : index
    %59 = vector.load %arg8[%c0_30, %c0_31] : memref<1x16xf32, #tpu.memory_space<vmem>>, vector<1x16xf32>
    %60 = vector.broadcast %59 : vector<1x16xf32> to vector<8x16xf32>
    %61 = arith.addf %58, %60 : vector<8x16xf32>
    %c0_32 = arith.constant 0 : index
    %c0_33 = arith.constant 0 : index
    %62 = vector.load %arg9[%c0_32, %c0_33] : memref<8x16xf32, #tpu.memory_space<vmem>>, vector<8x16xf32>
    tpu.vector_store %arg9[%c0_32, %c0_33], %61 {strides = array<i32>} : memref<8x16xf32, #tpu.memory_space<vmem>>, vector<8x16xf32>,
    return
  }
}

</mosaic_0001>

<llo_original>
// kernel: tpu_custom_call.1
$region0: #{tpu_custom_call.1}
  #allocation0 [shape = 'u32[]', space=smem, size = 0x4, offset = 0x4, fixed_abs, tag = 'smem constant byte address 0x4 - core index']
  #allocation1 [shape = 'u32[144,128]{1,0:T(1,128)}', space=vmem, size = 0x12000, scoped, tag = 'internal scratch']
  %s0 = inlined_call_operand.vmem [shape: s32[64,1], index: 0, kind: input, shape index: {}]
  %s1 = inlined_call_operand.vmem [shape: f32[16,32], index: 1, kind: input, shape index: {}]
  %s2 = inlined_call_operand.vmem [shape: f32[32,32], index: 2, kind: input, shape index: {}]
  %s3 = inlined_call_operand.vmem [shape: f32[32,32], index: 3, kind: input, shape index: {}]
  %s4 = inlined_call_operand.vmem [shape: f32[1,32], index: 4, kind: input, shape index: {}]
  %s5 = inlined_call_operand.vmem [shape: f32[32,1024], index: 5, kind: input, shape index: {}]
  %s6 = inlined_call_operand.vmem [shape: f32[1,1024], index: 6, kind: input, shape index: {}]
  %s7 = inlined_call_operand.vmem [shape: f32[1024,16], index: 7, kind: input, shape index: {}]
  %s8 = inlined_call_operand.vmem [shape: f32[1,16], index: 8, kind: input, shape index: {}]
  %s9 = inlined_call_operand.hbm [shape: f32[8,16], index: 9, kind: output, shape index: {}]
  %s10 = sld [smem:[#allocation0]]
  $region46: #{tpu_custom_call.1} parent=0
    _
  %s12 = ssub.s32 1, %s10
  %s13 = scalar_select 0, %s12, %s10
  $region1: #{tpu_custom_call.1} parent=0
    #allocation2 [shape = 'u8[4096]{0}', space=vmem, size = 0x1000, scoped, tag = 'output window, operand 0, single buffered']
    #allocation3 [shape = 's32[1]{0}', space=sflag, size = 0x4, scoped, tag = 'scoped memory for tpu_custom_call.1']
    %14 = vsyncpa [#allocation3], 0
    // Predicated region
    $region2: #{tpu_custom_call.1} parent=1 // pred_check
      _
    $region3: #{tpu_custom_call.1} parent=1 // pred_check_branch
      %16 = sbr.rel (0) target = $region5
    $region4: #{tpu_custom_call.1} parent=1 // pred_region
      _
    $region5: #{tpu_custom_call.1} parent=1 // pred_fallthru
      _
    // Predicated region
    $region6: #{tpu_custom_call.1} parent=1 // pred_check
      _
    $region7: #{tpu_custom_call.1} parent=1 // pred_check_branch
      %18 = sbr.rel (0) target = $region9
    $region8: #{tpu_custom_call.1} parent=1 // pred_region
      _
    $region9: #{tpu_custom_call.1} parent=1 // pred_fallthru
      _
    // Predicated region
    $region10: #{tpu_custom_call.1} parent=1 // pred_check
      _
    $region11: #{tpu_custom_call.1} parent=1 // pred_check_branch
      %20 = sbr.rel (0) target = $region13
    $region12: #{tpu_custom_call.1} parent=1 // pred_region
      _
    $region13: #{tpu_custom_call.1} parent=1 // pred_fallthru
      _
    // Predicated region
    $region14: #{tpu_custom_call.1} parent=1 // pred_check
      _
    $region15: #{tpu_custom_call.1} parent=1 // pred_check_branch
      %22 = sbr.rel (0) target = $region17
    $region16: #{tpu_custom_call.1} parent=1 // pred_region
      _
    $region17: #{tpu_custom_call.1} parent=1 // pred_fallthru
      _
    // Predicated region
    $region18: #{tpu_custom_call.1} parent=1 // pred_check
      _
    $region19: #{tpu_custom_call.1} parent=1 // pred_check_branch
      %24 = sbr.rel (0) target = $region21
    $region20: #{tpu_custom_call.1} parent=1 // pred_region
      _
    $region21: #{tpu_custom_call.1} parent=1 // pred_fallthru
      _
    // Predicated region
    $region22: #{tpu_custom_call.1} parent=1 // pred_check
      _
    $region23: #{tpu_custom_call.1} parent=1 // pred_check_branch
      %26 = sbr.rel (0) target = $region25
    $region24: #{tpu_custom_call.1} parent=1 // pred_region
      _
    $region25: #{tpu_custom_call.1} parent=1 // pred_fallthru
      _
    // Predicated region
    $region26: #{tpu_custom_call.1} parent=1 // pred_check
      _
    $region27: #{tpu_custom_call.1} parent=1 // pred_check_branch
      %28 = sbr.rel (0) target = $region29
    $region28: #{tpu_custom_call.1} parent=1 // pred_region
      _
    $region29: #{tpu_custom_call.1} parent=1 // pred_fallthru
      _
    // Predicated region
    $region30: #{tpu_custom_call.1} parent=1 // pred_check
      _
    $region31: #{tpu_custom_call.1} parent=1 // pred_check_branch
      %30 = sbr.rel (0) target = $region33
    $region32: #{tpu_custom_call.1} parent=1 // pred_region
      _
    $region33: #{tpu_custom_call.1} parent=1 // pred_fallthru
      _
    // Predicated region
    $region34: #{tpu_custom_call.1} parent=1 // pred_check
      _
    $region35: #{tpu_custom_call.1} parent=1 // pred_check_branch
      %32 = sbr.rel (0) target = $region37
    $region36: #{tpu_custom_call.1} parent=1 // pred_region
      _
    $region37: #{tpu_custom_call.1} parent=1 // pred_fallthru
      _
    %v33 = vld [vmem:[%s0] sm:$0xff]
    %v34 = vld [vmem:[%s0 + $0x8] sm:$0xff]
    %v35 = vld [vmem:[%s0 + $0x10] sm:$0xff]
    %v36 = vld [vmem:[%s0 + $0x18] sm:$0xff]
    %v37 = vld [vmem:[%s0 + $0x20] sm:$0xff]
    %v38 = vld [vmem:[%s0 + $0x28] sm:$0xff]
    %v39 = vld [vmem:[%s0 + $0x30] sm:$0xff]
    %v40 = vld [vmem:[%s0 + $0x38] sm:$0xff]
    %v41 = vlaneseq
    %v42 = vand.u32 %v41, 127
    %43 = vset.pattern.permute.xlu0 0
    %44 = vperm.xlu0 %43, %v33
    %v45 = vpop.permute.xlu0 %44
    %46 = vset.pattern.permute.xlu0 0
    %47 = vperm.xlu0 %46, %v34
    %v48 = vpop.permute.xlu0 %47
    %49 = vset.pattern.permute.xlu0 0
    %50 = vperm.xlu0 %49, %v35
    %v51 = vpop.permute.xlu0 %50
    %52 = vset.pattern.permute.xlu0 0
    %53 = vperm.xlu0 %52, %v36
    %v54 = vpop.permute.xlu0 %53
    %55 = vset.pattern.permute.xlu0 0
    %56 = vperm.xlu0 %55, %v37
    %v57 = vpop.permute.xlu0 %56
    %58 = vset.pattern.permute.xlu0 0
    %59 = vperm.xlu0 %58, %v38
    %v60 = vpop.permute.xlu0 %59
    %61 = vset.pattern.permute.xlu0 0
    %62 = vperm.xlu0 %61, %v39
    %v63 = vpop.permute.xlu0 %62
    %64 = vset.pattern.permute.xlu0 0
    %65 = vperm.xlu0 %64, %v40
    %v66 = vpop.permute.xlu0 %65
    %vm67 = vcmp.eq.s32.totalorder %v42, %v45
    %vm68 = vcmp.eq.s32.totalorder %v42, %v48
    %vm69 = vcmp.eq.s32.totalorder %v42, %v51
    %vm70 = vcmp.eq.s32.totalorder %v42, %v54
    %vm71 = vcmp.eq.s32.totalorder %v42, %v57
    %vm72 = vcmp.eq.s32.totalorder %v42, %v60
    %vm73 = vcmp.eq.s32.totalorder %v42, %v63
    %vm74 = vcmp.eq.s32.totalorder %v42, %v66
    %v75 = vsel %vm67, 1.0, 0.0
    %v76 = vsel %vm68, 1.0, 0.0
    %v77 = vsel %vm69, 1.0, 0.0
    %v78 = vsel %vm70, 1.0, 0.0
    %v79 = vsel %vm71, 1.0, 0.0
    %v80 = vsel %vm72, 1.0, 0.0
    %v81 = vsel %vm73, 1.0, 0.0
    %v82 = vsel %vm74, 1.0, 0.0
    %v83 = vld [vmem:[%s1] sm:$0xff]
    %v84 = vld [vmem:[%s1 + $0x8] sm:$0xff]
    %vm85 = vcmask 130048
    %v87 = vsel %vm85, %v75, 0
    %v90 = vsel %vm85, %v76, 0
    %v93 = vsel %vm85, %v77, 0
    %v96 = vsel %vm85, %v78, 0
    %v99 = vsel %vm85, %v79, 0
    %v102 = vsel %vm85, %v80, 0
    %v105 = vsel %vm85, %v81, 0
    %v108 = vsel %vm85, %v82, 0
    %110 = vmatprep.subr.mxu0 0.0
    %111 = vmatpush1.msra.mxu0 %v83
    %112 = vmatprep.subr.mxu0 0.0
    %113 = vmatpush1.msra.mxu0 %v84
    %114 = vmatprep.subr.mxu0 0.0
    %115 = vmatpush1.msra.mxu0 0.0
    %116 = vmatprep.subr.mxu0 0.0
    %117 = vmatpush1.msra.mxu0 0.0
    %118 = vmatprep.subr.mxu0 0.0
    %119 = vmatpush1.msra.mxu0 0.0
    %120 = vmatprep.subr.mxu0 0.0
    %121 = vmatpush1.msra.mxu0 0.0
    %122 = vmatprep.subr.mxu0 0.0
    %123 = vmatpush1.msra.mxu0 0.0
    %124 = vmatprep.subr.mxu0 0.0
    %125 = vmatpush1.msra.mxu0 0.0
    %126 = vmatprep.subr.mxu0 0.0
    %127 = vmatpush1.msra.mxu0 0.0
    %128 = vmatprep.subr.mxu0 0.0
    %129 = vmatpush1.msra.mxu0 0.0
    %130 = vmatprep.subr.mxu0 0.0
    %131 = vmatpush1.msra.mxu0 0.0
    %132 = vmatprep.subr.mxu0 0.0
    %133 = vmatpush1.msra.mxu0 0.0
    %134 = vmatprep.subr.mxu0 0.0
    %135 = vmatpush1.msra.mxu0 0.0
    %136 = vmatprep.subr.mxu0 0.0
    %137 = vmatpush1.msra.mxu0 0.0
    %138 = vmatprep.subr.mxu0 0.0
    %139 = vmatpush1.msra.mxu0 0.0
    %140 = vmatprep.subr.mxu0 0.0
    %141 = vmatpush1.msra.mxu0 0.0
    %142 = vmatprep.subr.mxu0 0.0
    %143 = vmatpush1.msra.mxu0 0.0
    %144 = vmatprep.subr.mxu0 0.0
    %145 = vmatpush1.msra.mxu0 0.0
    %146 = vmatprep.subr.mxu0 0.0
    %147 = vmatpush1.msra.mxu0 0.0
    %148 = vmatprep.subr.mxu0 0.0
    %149 = vmatpush1.msra.mxu0 0.0
    %150 = vmatprep.subr.mxu0 0.0
    %151 = vmatpush1.msra.mxu0 0.0
    %152 = vmatprep.subr.mxu0 0.0
    %153 = vmatpush1.msra.mxu0 0.0
    %154 = vmatprep.subr.mxu0 0.0
    %155 = vmatpush1.msra.mxu0 0.0
    %156 = vmatprep.subr.mxu0 0.0
    %157 = vmatpush1.msra.mxu0 0.0
    %158 = vmatprep.subr.mxu0 0.0
    %159 = vmatpush1.msra.mxu0 0.0
    %160 = vmatprep.subr.mxu0 0.0
    %161 = vmatpush1.msra.mxu0 0.0
    %162 = vmatprep.subr.mxu0 0.0
    %163 = vmatpush1.msra.mxu0 0.0
    %164 = vmatprep.subr.mxu0 0.0
    %165 = vmatpush1.msra.mxu0 0.0
    %166 = vmatprep.subr.mxu0 0.0
    %167 = vmatpush1.msra.mxu0 0.0
    %168 = vmatprep.subr.mxu0 0.0
    %169 = vmatpush1.msra.mxu0 0.0
    %170 = vmatprep.subr.mxu0 0.0
    %171 = vmatpush1.msra.mxu0 0.0
    %172 = vmatprep.subr.mxu0 0.0
    %173 = vmatpush1.msra.mxu0 0.0
    %174 = vmatprep.mubr.f32.mxu0 0.0
    %175 = vmatmul.mubr.f32.gmra.mrb[0].mxu0 %v87
    %v176 = vpop.f32.mrb[0].mxu0
    %v177 = vadd.f32 0.0, %v176
    %v178 = vpop.f32.mrb[0].mxu0
    %179 = vmatprep.mubr.f32.mxu0 0.0
    %180 = vmatmul.mubr.f32.gmra.mrb[0].mxu0 %v90
    %v181 = vpop.f32.mrb[0].mxu0
    %v182 = vadd.f32 0.0, %v181
    %v183 = vpop.f32.mrb[0].mxu0
    %184 = vmatprep.mubr.f32.mxu0 0.0
    %185 = vmatmul.mubr.f32.gmra.mrb[0].mxu0 %v93
    %v186 = vpop.f32.mrb[0].mxu0
    %v187 = vadd.f32 0.0, %v186
    %v188 = vpop.f32.mrb[0].mxu0
    %189 = vmatprep.mubr.f32.mxu0 0.0
    %190 = vmatmul.mubr.f32.gmra.mrb[0].mxu0 %v96
    %v191 = vpop.f32.mrb[0].mxu0
    %v192 = vadd.f32 0.0, %v191
    %v193 = vpop.f32.mrb[0].mxu0
    %194 = vmatprep.mubr.f32.mxu0 0.0
    %195 = vmatmul.mubr.f32.gmra.mrb[0].mxu0 %v99
    %v196 = vpop.f32.mrb[0].mxu0
    %v197 = vadd.f32 0.0, %v196
    %v198 = vpop.f32.mrb[0].mxu0
    %199 = vmatprep.mubr.f32.mxu0 0.0
    %200 = vmatmul.mubr.f32.gmra.mrb[0].mxu0 %v102
    %v201 = vpop.f32.mrb[0].mxu0
    %v202 = vadd.f32 0.0, %v201
    %v203 = vpop.f32.mrb[0].mxu0
    %204 = vmatprep.mubr.f32.mxu0 0.0
    %205 = vmatmul.mubr.f32.gmra.mrb[0].mxu0 %v105
    %v206 = vpop.f32.mrb[0].mxu0
    %v207 = vadd.f32 0.0, %v206
    %v208 = vpop.f32.mrb[0].mxu0
    %209 = vmatprep.mubr.f32.mxu0 0.0
    %210 = vmatmul.mubr.f32.gmra.mrb[0].mxu0 %v108
    %v211 = vpop.f32.mrb[0].mxu0
    %v212 = vadd.f32 0.0, %v211
    %v213 = vpop.f32.mrb[0].mxu0
    %214 = vdwg.mxu0
    %v215 = vld [vmem:[%s2] sm:$0xff]
    %v216 = vld [vmem:[%s2 + $0x8] sm:$0xff]
    %v217 = vld [vmem:[%s2 + $0x10] sm:$0xff]
    %v218 = vld [vmem:[%s2 + $0x18] sm:$0xff]
    %vm219 = vcmask 261120
    %v221 = vsel %vm219, 0.0, 0
    %223 = vmatprep.subr.mxu0 0.0
    %224 = vmatpush1.msra.mxu0 %v215
    %225 = vmatprep.subr.mxu0 0.0
    %226 = vmatpush1.msra.mxu0 %v216
    %227 = vmatprep.subr.mxu0 0.0
    %228 = vmatpush1.msra.mxu0 %v217
    %229 = vmatprep.subr.mxu0 0.0
    %230 = vmatpush1.msra.mxu0 %v218
    %231 = vmatprep.subr.mxu0 0.0
    %232 = vmatpush1.msra.mxu0 0.0
    %233 = vmatprep.subr.mxu0 0.0
    %234 = vmatpush1.msra.mxu0 0.0
    %235 = vmatprep.subr.mxu0 0.0
    %236 = vmatpush1.msra.mxu0 0.0
    %237 = vmatprep.subr.mxu0 0.0
    %238 = vmatpush1.msra.mxu0 0.0
    %239 = vmatprep.subr.mxu0 0.0
    %240 = vmatpush1.msra.mxu0 0.0
    %241 = vmatprep.subr.mxu0 0.0
    %242 = vmatpush1.msra.mxu0 0.0
    %243 = vmatprep.subr.mxu0 0.0
    %244 = vmatpush1.msra.mxu0 0.0
    %245 = vmatprep.subr.mxu0 0.0
    %246 = vmatpush1.msra.mxu0 0.0
    %247 = vmatprep.subr.mxu0 0.0
    %248 = vmatpush1.msra.mxu0 0.0
    %249 = vmatprep.subr.mxu0 0.0
    %250 = vmatpush1.msra.mxu0 0.0
    %251 = vmatprep.subr.mxu0 0.0
    %252 = vmatpush1.msra.mxu0 0.0
    %253 = vmatprep.subr.mxu0 0.0
    %254 = vmatpush1.msra.mxu0 0.0
    %255 = vmatprep.subr.mxu0 0.0
    %256 = vmatpush1.msra.mxu0 0.0
    %257 = vmatprep.subr.mxu0 0.0
    %258 = vmatpush1.msra.mxu0 0.0
    %259 = vmatprep.subr.mxu0 0.0
    %260 = vmatpush1.msra.mxu0 0.0
    %261 = vmatprep.subr.mxu0 0.0
    %262 = vmatpush1.msra.mxu0 0.0
    %263 = vmatprep.subr.mxu0 0.0
    %264 = vmatpush1.msra.mxu0 0.0
    %265 = vmatprep.subr.mxu0 0.0
    %266 = vmatpush1.msra.mxu0 0.0
    %267 = vmatprep.subr.mxu0 0.0
    %268 = vmatpush1.msra.mxu0 0.0
    %269 = vmatprep.subr.mxu0 0.0
    %270 = vmatpush1.msra.mxu0 0.0
    %271 = vmatprep.subr.mxu0 0.0
    %272 = vmatpush1.msra.mxu0 0.0
    %273 = vmatprep.subr.mxu0 0.0
    %274 = vmatpush1.msra.mxu0 0.0
    %275 = vmatprep.subr.mxu0 0.0
    %276 = vmatpush1.msra.mxu0 0.0
    %277 = vmatprep.subr.mxu0 0.0
    %278 = vmatpush1.msra.mxu0 0.0
    %279 = vmatprep.subr.mxu0 0.0
    %280 = vmatpush1.msra.mxu0 0.0
    %281 = vmatprep.subr.mxu0 0.0
    %282 = vmatpush1.msra.mxu0 0.0
    %283 = vmatprep.subr.mxu0 0.0
    %284 = vmatpush1.msra.mxu0 0.0
    %285 = vmatprep.subr.mxu0 0.0
    %286 = vmatpush1.msra.mxu0 0.0
    %287 = vmatprep.mubr.f32.mxu0 0.0
    %288 = vmatmul.mubr.f32.gmra.mrb[0].mxu0 %v221
    %v289 = vpop.f32.mrb[0].mxu0
    %v290 = vadd.f32 0.0, %v289
    %v291 = vpop.f32.mrb[0].mxu0
    %292 = vdwg.mxu0
    %v293 = vadd.f32 %v177, %v290
    %v294 = vtanh.pop %v293
    %v296 = vsel %vm219, %v294, 0
    %298 = vmatprep.subr.mxu0 0.0
    %299 = vmatpush1.msra.mxu0 %v215
    %300 = vmatprep.subr.mxu0 0.0
    %301 = vmatpush1.msra.mxu0 %v216
    %302 = vmatprep.subr.mxu0 0.0
    %303 = vmatpush1.msra.mxu0 %v217
    %304 = vmatprep.subr.mxu0 0.0
    %305 = vmatpush1.msra.mxu0 %v218
    %306 = vmatprep.subr.mxu0 0.0
    %307 = vmatpush1.msra.mxu0 0.0
    %308 = vmatprep.subr.mxu0 0.0
    %309 = vmatpush1.msra.mxu0 0.0
    %310 = vmatprep.subr.mxu0 0.0
    %311 = vmatpush1.msra.mxu0 0.0
    %312 = vmatprep.subr.mxu0 0.0
    %313 = vmatpush1.msra.mxu0 0.0
    %314 = vmatprep.subr.mxu0 0.0
    %315 = vmatpush1.msra.mxu0 0.0
    %316 = vmatprep.subr.mxu0 0.0
    %317 = vmatpush1.msra.mxu0 0.0
    %318 = vmatprep.subr.mxu0 0.0
    %319 = vmatpush1.msra.mxu0 0.0
    %320 = vmatprep.subr.mxu0 0.0
    %321 = vmatpush1.msra.mxu0 0.0
    %322 = vmatprep.subr.mxu0 0.0
    %323 = vmatpush1.msra.mxu0 0.0
    %324 = vmatprep.subr.mxu0 0.0
    %325 = vmatpush1.msra.mxu0 0.0
    %326 = vmatprep.subr.mxu0 0.0
    %327 = vmatpush1.msra.mxu0 0.0
    %328 = vmatprep.subr.mxu0 0.0
    %329 = vmatpush1.msra.mxu0 0.0
    %330 = vmatprep.subr.mxu0 0.0
    %331 = vmatpush1.msra.mxu0 0.0
    %332 = vmatprep.subr.mxu0 0.0
    %333 = vmatpush1.msra.mxu0 0.0
    %334 = vmatprep.subr.mxu0 0.0
    %335 = vmatpush1.msra.mxu0 0.0
    %336 = vmatprep.subr.mxu0 0.0
    %337 = vmatpush1.msra.mxu0 0.0
    %338 = vmatprep.subr.mxu0 0.0
    %339 = vmatpush1.msra.mxu0 0.0
    %340 = vmatprep.subr.mxu0 0.0
    %341 = vmatpush1.msra.mxu0 0.0
    %342 = vmatprep.subr.mxu0 0.0
    %343 = vmatpush1.msra.mxu0 0.0
    %344 = vmatprep.subr.mxu0 0.0
    %345 = vmatpush1.msra.mxu0 0.0
    %346 = vmatprep.subr.mxu0 0.0
    %347 = vmatpush1.msra.mxu0 0.0
    %348 = vmatprep.subr.mxu0 0.0
    %349 = vmatpush1.msra.mxu0 0.0
    %350 = vmatprep.subr.mxu0 0.0
    %351 = vmatpush1.msra.mxu0 0.0
    %352 = vmatprep.subr.mxu0 0.0
    %353 = vmatpush1.msra.mxu0 0.0
    %354 = vmatprep.subr.mxu0 0.0
    %355 = vmatpush1.msra.mxu0 0.0
    %356 = vmatprep.subr.mxu0 0.0
    %357 = vmatpush1.msra.mxu0 0.0
    %358 = vmatprep.subr.mxu0 0.0
    %359 = vmatpush1.msra.mxu0 0.0
    %360 = vmatprep.subr.mxu0 0.0
    %361 = vmatpush1.msra.mxu0 0.0
    %362 = vmatprep.mubr.f32.mxu0 0.0
    %363 = vmatmul.mubr.f32.gmra.mrb[0].mxu0 %v296
    %v364 = vpop.f32.mrb[0].mxu0
    %v365 = vadd.f32 0.0, %v364
    %v366 = vpop.f32.mrb[0].mxu0
    %367 = vdwg.mxu0
    %v368 = vadd.f32 %v182, %v365
    %v369 = vtanh.pop %v368
    %v371 = vsel %vm219, %v369, 0
    %373 = vmatprep.subr.mxu0 0.0
    %374 = vmatpush1.msra.mxu0 %v215
    %375 = vmatprep.subr.mxu0 0.0
    %376 = vmatpush1.msra.mxu0 %v216
    %377 = vmatprep.subr.mxu0 0.0
    %378 = vmatpush1.msra.mxu0 %v217
    %379 = vmatprep.subr.mxu0 0.0
    %380 = vmatpush1.msra.mxu0 %v218
    %381 = vmatprep.subr.mxu0 0.0
    %382 = vmatpush1.msra.mxu0 0.0
    %383 = vmatprep.subr.mxu0 0.0
    %384 = vmatpush1.msra.mxu0 0.0
    %385 = vmatprep.subr.mxu0 0.0
    %386 = vmatpush1.msra.mxu0 0.0
    %387 = vmatprep.subr.mxu0 0.0
    %388 = vmatpush1.msra.mxu0 0.0
    %389 = vmatprep.subr.mxu0 0.0
    %390 = vmatpush1.msra.mxu0 0.0
    %391 = vmatprep.subr.mxu0 0.0
    %392 = vmatpush1.msra.mxu0 0.0
    %393 = vmatprep.subr.mxu0 0.0
    %394 = vmatpush1.msra.mxu0 0.0
    %395 = vmatprep.subr.mxu0 0.0
    %396 = vmatpush1.msra.mxu0 0.0
    %397 = vmatprep.subr.mxu0 0.0
    %398 = vmatpush1.msra.mxu0 0.0
    %399 = vmatprep.subr.mxu0 0.0
    %400 = vmatpush1.msra.mxu0 0.0
    %401 = vmatprep.subr.mxu0 0.0
    %402 = vmatpush1.msra.mxu0 0.0
    %403 = vmatprep.subr.mxu0 0.0
    %404 = vmatpush1.msra.mxu0 0.0
    %405 = vmatprep.subr.mxu0 0.0
    %406 = vmatpush1.msra.mxu0 0.0
    %407 = vmatprep.subr.mxu0 0.0
    %408 = vmatpush1.msra.mxu0 0.0
    %409 = vmatprep.subr.mxu0 0.0
    %410 = vmatpush1.msra.mxu0 0.0
    %411 = vmatprep.subr.mxu0 0.0
    %412 = vmatpush1.msra.mxu0 0.0
    %413 = vmatprep.subr.mxu0 0.0
    %414 = vmatpush1.msra.mxu0 0.0
    %415 = vmatprep.subr.mxu0 0.0
    %416 = vmatpush1.msra.mxu0 0.0
    %417 = vmatprep.subr.mxu0 0.0
    %418 = vmatpush1.msra.mxu0 0.0
    %419 = vmatprep.subr.mxu0 0.0
    %420 = vmatpush1.msra.mxu0 0.0
    %421 = vmatprep.subr.mxu0 0.0
    %422 = vmatpush1.msra.mxu0 0.0
    %423 = vmatprep.subr.mxu0 0.0
    %424 = vmatpush1.msra.mxu0 0.0
    %425 = vmatprep.subr.mxu0 0.0
    %426 = vmatpush1.msra.mxu0 0.0
    %427 = vmatprep.subr.mxu0 0.0
    %428 = vmatpush1.msra.mxu0 0.0
    %429 = vmatprep.subr.mxu0 0.0
    %430 = vmatpush1.msra.mxu0 0.0
    %431 = vmatprep.subr.mxu0 0.0
    %432 = vmatpush1.msra.mxu0 0.0
    %433 = vmatprep.subr.mxu0 0.0
    %434 = vmatpush1.msra.mxu0 0.0
    %435 = vmatprep.subr.mxu0 0.0
    %436 = vmatpush1.msra.mxu0 0.0
    %437 = vmatprep.mubr.f32.mxu0 0.0
    %438 = vmatmul.mubr.f32.gmra.mrb[0].mxu0 %v371
    %v439 = vpop.f32.mrb[0].mxu0
    %v440 = vadd.f32 0.0, %v439
    %v441 = vpop.f32.mrb[0].mxu0
    %442 = vdwg.mxu0
    %v443 = vadd.f32 %v187, %v440
    %v444 = vtanh.pop %v443
    %v446 = vsel %vm219, %v444, 0
    %448 = vmatprep.subr.mxu0 0.0
    %449 = vmatpush1.msra.mxu0 %v215
    %450 = vmatprep.subr.mxu0 0.0
    %451 = vmatpush1.msra.mxu0 %v216
    %452 = vmatprep.subr.mxu0 0.0
    %453 = vmatpush1.msra.mxu0 %v217
    %454 = vmatprep.subr.mxu0 0.0
    %455 = vmatpush1.msra.mxu0 %v218
    %456 = vmatprep.subr.mxu0 0.0
    %457 = vmatpush1.msra.mxu0 0.0
    %458 = vmatprep.subr.mxu0 0.0
    %459 = vmatpush1.msra.mxu0 0.0
    %460 = vmatprep.subr.mxu0 0.0
    %461 = vmatpush1.msra.mxu0 0.0
    %462 = vmatprep.subr.mxu0 0.0
    %463 = vmatpush1.msra.mxu0 0.0
    %464 = vmatprep.subr.mxu0 0.0
    %465 = vmatpush1.msra.mxu0 0.0
    %466 = vmatprep.subr.mxu0 0.0
    %467 = vmatpush1.msra.mxu0 0.0
    %468 = vmatprep.subr.mxu0 0.0
    %469 = vmatpush1.msra.mxu0 0.0
    %470 = vmatprep.subr.mxu0 0.0
    %471 = vmatpush1.msra.mxu0 0.0
    %472 = vmatprep.subr.mxu0 0.0
    %473 = vmatpush1.msra.mxu0 0.0
    %474 = vmatprep.subr.mxu0 0.0
    %475 = vmatpush1.msra.mxu0 0.0
    %476 = vmatprep.subr.mxu0 0.0
    %477 = vmatpush1.msra.mxu0 0.0
    %478 = vmatprep.subr.mxu0 0.0
    %479 = vmatpush1.msra.mxu0 0.0
    %480 = vmatprep.subr.mxu0 0.0
    %481 = vmatpush1.msra.mxu0 0.0
    %482 = vmatprep.subr.mxu0 0.0
    %483 = vmatpush1.msra.mxu0 0.0
    %484 = vmatprep.subr.mxu0 0.0
    %485 = vmatpush1.msra.mxu0 0.0
    %486 = vmatprep.subr.mxu0 0.0
    %487 = vmatpush1.msra.mxu0 0.0
    %488 = vmatprep.subr.mxu0 0.0
    %489 = vmatpush1.msra.mxu0 0.0
    %490 = vmatprep.subr.mxu0 0.0
    %491 = vmatpush1.msra.mxu0 0.0
    %492 = vmatprep.subr.mxu0 0.0
    %493 = vmatpush1.msra.mxu0 0.0
    %494 = vmatprep.subr.mxu0 0.0
    %495 = vmatpush1.msra.mxu0 0.0
    %496 = vmatprep.subr.mxu0 0.0
    %497 = vmatpush1.msra.mxu0 0.0
    %498 = vmatprep.subr.mxu0 0.0
    %499 = vmatpush1.msra.mxu0 0.0
    %500 = vmatprep.subr.mxu0 0.0
    %501 = vmatpush1.msra.mxu0 0.0
    %502 = vmatprep.subr.mxu0 0.0
    %503 = vmatpush1.msra.mxu0 0.0
    %504 = vmatprep.subr.mxu0 0.0
    %505 = vmatpush1.msra.mxu0 0.0
    %506 = vmatprep.subr.mxu0 0.0
    %507 = vmatpush1.msra.mxu0 0.0
    %508 = vmatprep.subr.mxu0 0.0
    %509 = vmatpush1.msra.mxu0 0.0
    %510 = vmatprep.subr.mxu0 0.0
    %511 = vmatpush1.msra.mxu0 0.0
    %512 = vmatprep.mubr.f32.mxu0 0.0
    %513 = vmatmul.mubr.f32.gmra.mrb[0].mxu0 %v446
    %v514 = vpop.f32.mrb[0].mxu0
    %v515 = vadd.f32 0.0, %v514
    %v516 = vpop.f32.mrb[0].mxu0
    %517 = vdwg.mxu0
    %v518 = vadd.f32 %v192, %v515
    %v519 = vtanh.pop %v518
    %v521 = vsel %vm219, %v519, 0
    %523 = vmatprep.subr.mxu0 0.0
    %524 = vmatpush1.msra.mxu0 %v215
    %525 = vmatprep.subr.mxu0 0.0
    %526 = vmatpush1.msra.mxu0 %v216
    %527 = vmatprep.subr.mxu0 0.0
    %528 = vmatpush1.msra.mxu0 %v217
    %529 = vmatprep.subr.mxu0 0.0
    %530 = vmatpush1.msra.mxu0 %v218
    %531 = vmatprep.subr.mxu0 0.0
    %532 = vmatpush1.msra.mxu0 0.0
    %533 = vmatprep.subr.mxu0 0.0
    %534 = vmatpush1.msra.mxu0 0.0
    %535 = vmatprep.subr.mxu0 0.0
    %536 = vmatpush1.msra.mxu0 0.0
    %537 = vmatprep.subr.mxu0 0.0
    %538 = vmatpush1.msra.mxu0 0.0
    %539 = vmatprep.subr.mxu0 0.0
    %540 = vmatpush1.msra.mxu0 0.0
    %541 = vmatprep.subr.mxu0 0.0
    %542 = vmatpush1.msra.mxu0 0.0
    %543 = vmatprep.subr.mxu0 0.0
    %544 = vmatpush1.msra.mxu0 0.0
    %545 = vmatprep.subr.mxu0 0.0
    %546 = vmatpush1.msra.mxu0 0.0
    %547 = vmatprep.subr.mxu0 0.0
    %548 = vmatpush1.msra.mxu0 0.0
    %549 = vmatprep.subr.mxu0 0.0
    %550 = vmatpush1.msra.mxu0 0.0
    %551 = vmatprep.subr.mxu0 0.0
    %552 = vmatpush1.msra.mxu0 0.0
    %553 = vmatprep.subr.mxu0 0.0
    %554 = vmatpush1.msra.mxu0 0.0
    %555 = vmatprep.subr.mxu0 0.0
    %556 = vmatpush1.msra.mxu0 0.0
    %557 = vmatprep.subr.mxu0 0.0
    %558 = vmatpush1.msra.mxu0 0.0
    %559 = vmatprep.subr.mxu0 0.0
    %560 = vmatpush1.msra.mxu0 0.0
    %561 = vmatprep.subr.mxu0 0.0
    %562 = vmatpush1.msra.mxu0 0.0
    %563 = vmatprep.subr.mxu0 0.0
    %564 = vmatpush1.msra.mxu0 0.0
    %565 = vmatprep.subr.mxu0 0.0
    %566 = vmatpush1.msra.mxu0 0.0
    %567 = vmatprep.subr.mxu0 0.0
    %568 = vmatpush1.msra.mxu0 0.0
    %569 = vmatprep.subr.mxu0 0.0
    %570 = vmatpush1.msra.mxu0 0.0
    %571 = vmatprep.subr.mxu0 0.0
    %572 = vmatpush1.msra.mxu0 0.0
    %573 = vmatprep.subr.mxu0 0.0
    %574 = vmatpush1.msra.mxu0 0.0
    %575 = vmatprep.subr.mxu0 0.0
    %576 = vmatpush1.msra.mxu0 0.0
    %577 = vmatprep.subr.mxu0 0.0
    %578 = vmatpush1.msra.mxu0 0.0
    %579 = vmatprep.subr.mxu0 0.0
    %580 = vmatpush1.msra.mxu0 0.0
    %581 = vmatprep.subr.mxu0 0.0
    %582 = vmatpush1.msra.mxu0 0.0
    %583 = vmatprep.subr.mxu0 0.0
    %584 = vmatpush1.msra.mxu0 0.0
    %585 = vmatprep.subr.mxu0 0.0
    %586 = vmatpush1.msra.mxu0 0.0
    %587 = vmatprep.mubr.f32.mxu0 0.0
    %588 = vmatmul.mubr.f32.gmra.mrb[0].mxu0 %v521
    %v589 = vpop.f32.mrb[0].mxu0
    %v590 = vadd.f32 0.0, %v589
    %v591 = vpop.f32.mrb[0].mxu0
    %592 = vdwg.mxu0
    %v593 = vadd.f32 %v197, %v590
    %v594 = vtanh.pop %v593
    %v596 = vsel %vm219, %v594, 0
    %598 = vmatprep.subr.mxu0 0.0
    %599 = vmatpush1.msra.mxu0 %v215
    %600 = vmatprep.subr.mxu0 0.0
    %601 = vmatpush1.msra.mxu0 %v216
    %602 = vmatprep.subr.mxu0 0.0
    %603 = vmatpush1.msra.mxu0 %v217
    %604 = vmatprep.subr.mxu0 0.0
    %605 = vmatpush1.msra.mxu0 %v218
    %606 = vmatprep.subr.mxu0 0.0
    %607 = vmatpush1.msra.mxu0 0.0
    %608 = vmatprep.subr.mxu0 0.0
    %609 = vmatpush1.msra.mxu0 0.0
    %610 = vmatprep.subr.mxu0 0.0
    %611 = vmatpush1.msra.mxu0 0.0
    %612 = vmatprep.subr.mxu0 0.0
    %613 = vmatpush1.msra.mxu0 0.0
    %614 = vmatprep.subr.mxu0 0.0
    %615 = vmatpush1.msra.mxu0 0.0
    %616 = vmatprep.subr.mxu0 0.0
    %617 = vmatpush1.msra.mxu0 0.0
    %618 = vmatprep.subr.mxu0 0.0
    %619 = vmatpush1.msra.mxu0 0.0
    %620 = vmatprep.subr.mxu0 0.0
    %621 = vmatpush1.msra.mxu0 0.0
    %622 = vmatprep.subr.mxu0 0.0
    %623 = vmatpush1.msra.mxu0 0.0
    %624 = vmatprep.subr.mxu0 0.0
    %625 = vmatpush1.msra.mxu0 0.0
    %626 = vmatprep.subr.mxu0 0.0
    %627 = vmatpush1.msra.mxu0 0.0
    %628 = vmatprep.subr.mxu0 0.0
    %629 = vmatpush1.msra.mxu0 0.0
    %630 = vmatprep.subr.mxu0 0.0
    %631 = vmatpush1.msra.mxu0 0.0
    %632 = vmatprep.subr.mxu0 0.0
    %633 = vmatpush1.msra.mxu0 0.0
    %634 = vmatprep.subr.mxu0 0.0
    %635 = vmatpush1.msra.mxu0 0.0
    %636 = vmatprep.subr.mxu0 0.0
    %637 = vmatpush1.msra.mxu0 0.0
    %638 = vmatprep.subr.mxu0 0.0
    %639 = vmatpush1.msra.mxu0 0.0
    %640 = vmatprep.subr.mxu0 0.0
    %641 = vmatpush1.msra.mxu0 0.0
    %642 = vmatprep.subr.mxu0 0.0
    %643 = vmatpush1.msra.mxu0 0.0
    %644 = vmatprep.subr.mxu0 0.0
    %645 = vmatpush1.msra.mxu0 0.0
    %646 = vmatprep.subr.mxu0 0.0
    %647 = vmatpush1.msra.mxu0 0.0
    %648 = vmatprep.subr.mxu0 0.0
    %649 = vmatpush1.msra.mxu0 0.0
    %650 = vmatprep.subr.mxu0 0.0
    %651 = vmatpush1.msra.mxu0 0.0
    %652 = vmatprep.subr.mxu0 0.0
    %653 = vmatpush1.msra.mxu0 0.0
    %654 = vmatprep.subr.mxu0 0.0
    %655 = vmatpush1.msra.mxu0 0.0
    %656 = vmatprep.subr.mxu0 0.0
    %657 = vmatpush1.msra.mxu0 0.0
    %658 = vmatprep.subr.mxu0 0.0
    %659 = vmatpush1.msra.mxu0 0.0
    %660 = vmatprep.subr.mxu0 0.0
    %661 = vmatpush1.msra.mxu0 0.0
    %662 = vmatprep.mubr.f32.mxu0 0.0
    %663 = vmatmul.mubr.f32.gmra.mrb[0].mxu0 %v596
    %v664 = vpop.f32.mrb[0].mxu0
    %v665 = vadd.f32 0.0, %v664
    %v666 = vpop.f32.mrb[0].mxu0
    %667 = vdwg.mxu0
    %v668 = vadd.f32 %v202, %v665
    %v669 = vtanh.pop %v668
    %v671 = vsel %vm219, %v669, 0
    %673 = vmatprep.subr.mxu0 0.0
    %674 = vmatpush1.msra.mxu0 %v215
    %675 = vmatprep.subr.mxu0 0.0
    %676 = vmatpush1.msra.mxu0 %v216
    %677 = vmatprep.subr.mxu0 0.0
    %678 = vmatpush1.msra.mxu0 %v217
    %679 = vmatprep.subr.mxu0 0.0
    %680 = vmatpush1.msra.mxu0 %v218
    %681 = vmatprep.subr.mxu0 0.0
    %682 = vmatpush1.msra.mxu0 0.0
    %683 = vmatprep.subr.mxu0 0.0
    %684 = vmatpush1.msra.mxu0 0.0
    %685 = vmatprep.subr.mxu0 0.0
    %686 = vmatpush1.msra.mxu0 0.0
    %687 = vmatprep.subr.mxu0 0.0
    %688 = vmatpush1.msra.mxu0 0.0
    %689 = vmatprep.subr.mxu0 0.0
    %690 = vmatpush1.msra.mxu0 0.0
    %691 = vmatprep.subr.mxu0 0.0
    %692 = vmatpush1.msra.mxu0 0.0
    %693 = vmatprep.subr.mxu0 0.0
    %694 = vmatpush1.msra.mxu0 0.0
    %695 = vmatprep.subr.mxu0 0.0
    %696 = vmatpush1.msra.mxu0 0.0
    %697 = vmatprep.subr.mxu0 0.0
    %698 = vmatpush1.msra.mxu0 0.0
    %699 = vmatprep.subr.mxu0 0.0
    %700 = vmatpush1.msra.mxu0 0.0
    %701 = vmatprep.subr.mxu0 0.0
    %702 = vmatpush1.msra.mxu0 0.0
    %703 = vmatprep.subr.mxu0 0.0
    %704 = vmatpush1.msra.mxu0 0.0
    %705 = vmatprep.subr.mxu0 0.0
    %706 = vmatpush1.msra.mxu0 0.0
    %707 = vmatprep.subr.mxu0 0.0
    %708 = vmatpush1.msra.mxu0 0.0
    %709 = vmatprep.subr.mxu0 0.0
    %710 = vmatpush1.msra.mxu0 0.0
    %711 = vmatprep.subr.mxu0 0.0
    %712 = vmatpush1.msra.mxu0 0.0
    %713 = vmatprep.subr.mxu0 0.0
    %714 = vmatpush1.msra.mxu0 0.0
    %715 = vmatprep.subr.mxu0 0.0
    %716 = vmatpush1.msra.mxu0 0.0
    %717 = vmatprep.subr.mxu0 0.0
    %718 = vmatpush1.msra.mxu0 0.0
    %719 = vmatprep.subr.mxu0 0.0
    %720 = vmatpush1.msra.mxu0 0.0
    %721 = vmatprep.subr.mxu0 0.0
    %722 = vmatpush1.msra.mxu0 0.0
    %723 = vmatprep.subr.mxu0 0.0
    %724 = vmatpush1.msra.mxu0 0.0
    %725 = vmatprep.subr.mxu0 0.0
    %726 = vmatpush1.msra.mxu0 0.0
    %727 = vmatprep.subr.mxu0 0.0
    %728 = vmatpush1.msra.mxu0 0.0
    %729 = vmatprep.subr.mxu0 0.0
    %730 = vmatpush1.msra.mxu0 0.0
    %731 = vmatprep.subr.mxu0 0.0
    %732 = vmatpush1.msra.mxu0 0.0
    %733 = vmatprep.subr.mxu0 0.0
    %734 = vmatpush1.msra.mxu0 0.0
    %735 = vmatprep.subr.mxu0 0.0
    %736 = vmatpush1.msra.mxu0 0.0
    %737 = vmatprep.mubr.f32.mxu0 0.0
    %738 = vmatmul.mubr.f32.gmra.mrb[0].mxu0 %v671
    %v739 = vpop.f32.mrb[0].mxu0
    %v740 = vadd.f32 0.0, %v739
    %v741 = vpop.f32.mrb[0].mxu0
    %742 = vdwg.mxu0
    %v743 = vadd.f32 %v207, %v740
    %v744 = vtanh.pop %v743
    %v746 = vsel %vm219, %v744, 0
    %748 = vmatprep.subr.mxu0 0.0
    %749 = vmatpush1.msra.mxu0 %v215
    %750 = vmatprep.subr.mxu0 0.0
    %751 = vmatpush1.msra.mxu0 %v216
    %752 = vmatprep.subr.mxu0 0.0
    %753 = vmatpush1.msra.mxu0 %v217
    %754 = vmatprep.subr.mxu0 0.0
    %755 = vmatpush1.msra.mxu0 %v218
    %756 = vmatprep.subr.mxu0 0.0
    %757 = vmatpush1.msra.mxu0 0.0
    %758 = vmatprep.subr.mxu0 0.0
    %759 = vmatpush1.msra.mxu0 0.0
    %760 = vmatprep.subr.mxu0 0.0
    %761 = vmatpush1.msra.mxu0 0.0
    %762 = vmatprep.subr.mxu0 0.0
    %763 = vmatpush1.msra.mxu0 0.0
    %764 = vmatprep.subr.mxu0 0.0
    %765 = vmatpush1.msra.mxu0 0.0
    %766 = vmatprep.subr.mxu0 0.0
    %767 = vmatpush1.msra.mxu0 0.0
    %768 = vmatprep.subr.mxu0 0.0
    %769 = vmatpush1.msra.mxu0 0.0
    %770 = vmatprep.subr.mxu0 0.0
    %771 = vmatpush1.msra.mxu0 0.0
    %772 = vmatprep.subr.mxu0 0.0
    %773 = vmatpush1.msra.mxu0 0.0
    %774 = vmatprep.subr.mxu0 0.0
    %775 = vmatpush1.msra.mxu0 0.0
    %776 = vmatprep.subr.mxu0 0.0
    %777 = vmatpush1.msra.mxu0 0.0
    %778 = vmatprep.subr.mxu0 0.0
    %779 = vmatpush1.msra.mxu0 0.0
    %780 = vmatprep.subr.mxu0 0.0
    %781 = vmatpush1.msra.mxu0 0.0
    %782 = vmatprep.subr.mxu0 0.0
    %783 = vmatpush1.msra.mxu0 0.0
    %784 = vmatprep.subr.mxu0 0.0
    %785 = vmatpush1.msra.mxu0 0.0
    %786 = vmatprep.subr.mxu0 0.0
    %787 = vmatpush1.msra.mxu0 0.0
    %788 = vmatprep.subr.mxu0 0.0
    %789 = vmatpush1.msra.mxu0 0.0
    %790 = vmatprep.subr.mxu0 0.0
    %791 = vmatpush1.msra.mxu0 0.0
    %792 = vmatprep.subr.mxu0 0.0
    %793 = vmatpush1.msra.mxu0 0.0
    %794 = vmatprep.subr.mxu0 0.0
    %795 = vmatpush1.msra.mxu0 0.0
    %796 = vmatprep.subr.mxu0 0.0
    %797 = vmatpush1.msra.mxu0 0.0
    %798 = vmatprep.subr.mxu0 0.0
    %799 = vmatpush1.msra.mxu0 0.0
    %800 = vmatprep.subr.mxu0 0.0
    %801 = vmatpush1.msra.mxu0 0.0
    %802 = vmatprep.subr.mxu0 0.0
    %803 = vmatpush1.msra.mxu0 0.0
    %804 = vmatprep.subr.mxu0 0.0
    %805 = vmatpush1.msra.mxu0 0.0
    %806 = vmatprep.subr.mxu0 0.0
    %807 = vmatpush1.msra.mxu0 0.0
    %808 = vmatprep.subr.mxu0 0.0
    %809 = vmatpush1.msra.mxu0 0.0
    %810 = vmatprep.subr.mxu0 0.0
    %811 = vmatpush1.msra.mxu0 0.0
    %812 = vmatprep.mubr.f32.mxu0 0.0
    %813 = vmatmul.mubr.f32.gmra.mrb[0].mxu0 %v746
    %v814 = vpop.f32.mrb[0].mxu0
    %v815 = vadd.f32 0.0, %v814
    %v816 = vpop.f32.mrb[0].mxu0
    %817 = vdwg.mxu0
    %v818 = vadd.f32 %v212, %v815
    %v819 = vtanh.pop %v818
    %v820 = vld [vmem:[%s3] sm:$0xff]
    %v821 = vld [vmem:[%s3 + $0x8] sm:$0xff]
    %v822 = vld [vmem:[%s3 + $0x10] sm:$0xff]
    %v823 = vld [vmem:[%s3 + $0x18] sm:$0xff]
    %v824 = vld [vmem:[%s4] sm:$0x1]
    %v826 = vlaneseq
    %v827 = vshrl.u32 %v826, 7
    %v828 = vsub.s32 0, %v827
    %v829 = vrot.slane %v824, %v828
    %v832 = vsel %vm219, %v819, 0
    %834 = vmatprep.subr.mxu0 0.0
    %835 = vmatpush1.msra.mxu0 %v820
    %836 = vmatprep.subr.mxu0 0.0
    %837 = vmatpush1.msra.mxu0 %v821
    %838 = vmatprep.subr.mxu0 0.0
    %839 = vmatpush1.msra.mxu0 %v822
    %840 = vmatprep.subr.mxu0 0.0
    %841 = vmatpush1.msra.mxu0 %v823
    %842 = vmatprep.subr.mxu0 0.0
    %843 = vmatpush1.msra.mxu0 0.0
    %844 = vmatprep.subr.mxu0 0.0
    %845 = vmatpush1.msra.mxu0 0.0
    %846 = vmatprep.subr.mxu0 0.0
    %847 = vmatpush1.msra.mxu0 0.0
    %848 = vmatprep.subr.mxu0 0.0
    %849 = vmatpush1.msra.mxu0 0.0
    %850 = vmatprep.subr.mxu0 0.0
    %851 = vmatpush1.msra.mxu0 0.0
    %852 = vmatprep.subr.mxu0 0.0
    %853 = vmatpush1.msra.mxu0 0.0
    %854 = vmatprep.subr.mxu0 0.0
    %855 = vmatpush1.msra.mxu0 0.0
    %856 = vmatprep.subr.mxu0 0.0
    %857 = vmatpush1.msra.mxu0 0.0
    %858 = vmatprep.subr.mxu0 0.0
    %859 = vmatpush1.msra.mxu0 0.0
    %860 = vmatprep.subr.mxu0 0.0
    %861 = vmatpush1.msra.mxu0 0.0
    %862 = vmatprep.subr.mxu0 0.0
    %863 = vmatpush1.msra.mxu0 0.0
    %864 = vmatprep.subr.mxu0 0.0
    %865 = vmatpush1.msra.mxu0 0.0
    %866 = vmatprep.subr.mxu0 0.0
    %867 = vmatpush1.msra.mxu0 0.0
    %868 = vmatprep.subr.mxu0 0.0
    %869 = vmatpush1.msra.mxu0 0.0
    %870 = vmatprep.subr.mxu0 0.0
    %871 = vmatpush1.msra.mxu0 0.0
    %872 = vmatprep.subr.mxu0 0.0
    %873 = vmatpush1.msra.mxu0 0.0
    %874 = vmatprep.subr.mxu0 0.0
    %875 = vmatpush1.msra.mxu0 0.0
    %876 = vmatprep.subr.mxu0 0.0
    %877 = vmatpush1.msra.mxu0 0.0
    %878 = vmatprep.subr.mxu0 0.0
    %879 = vmatpush1.msra.mxu0 0.0
    %880 = vmatprep.subr.mxu0 0.0
    %881 = vmatpush1.msra.mxu0 0.0
    %882 = vmatprep.subr.mxu0 0.0
    %883 = vmatpush1.msra.mxu0 0.0
    %884 = vmatprep.subr.mxu0 0.0
    %885 = vmatpush1.msra.mxu0 0.0
    %886 = vmatprep.subr.mxu0 0.0
    %887 = vmatpush1.msra.mxu0 0.0
    %888 = vmatprep.subr.mxu0 0.0
    %889 = vmatpush1.msra.mxu0 0.0
    %890 = vmatprep.subr.mxu0 0.0
    %891 = vmatpush1.msra.mxu0 0.0
    %892 = vmatprep.subr.mxu0 0.0
    %893 = vmatpush1.msra.mxu0 0.0
    %894 = vmatprep.subr.mxu0 0.0
    %895 = vmatpush1.msra.mxu0 0.0
    %896 = vmatprep.subr.mxu0 0.0
    %897 = vmatpush1.msra.mxu0 0.0
    %898 = vmatprep.mubr.f32.mxu0 0.0
    %899 = vmatmul.mubr.f32.gmra.mrb[0].mxu0 %v832
    %v900 = vpop.f32.mrb[0].mxu0
    %v901 = vadd.f32 %v829, %v900
    %v902 = vpop.f32.mrb[0].mxu0
    %903 = vdwg.mxu0
    %v904 = vmax.f32 %v901, 0.0
    %v905 = vld [vmem:[%s5] sm:$0xff]
    %v906 = vld [vmem:[%s5 + $0x8] sm:$0xff]
    %v907 = vld [vmem:[%s5 + $0x10] sm:$0xff]
    %v908 = vld [vmem:[%s5 + $0x18] sm:$0xff]
    %v909 = vld [vmem:[%s5 + $0x20] sm:$0xff]
    %v910 = vld [vmem:[%s5 + $0x28] sm:$0xff]
    %v911 = vld [vmem:[%s5 + $0x30] sm:$0xff]
    %v912 = vld [vmem:[%s5 + $0x38] sm:$0xff]
    %v913 = vld [vmem:[%s5 + $0x40] sm:$0xff]
    %v914 = vld [vmem:[%s5 + $0x48] sm:$0xff]
    %v915 = vld [vmem:[%s5 + $0x50] sm:$0xff]
    %v916 = vld [vmem:[%s5 + $0x58] sm:$0xff]
    %v917 = vld [vmem:[%s5 + $0x60] sm:$0xff]
    %v918 = vld [vmem:[%s5 + $0x68] sm:$0xff]
    %v919 = vld [vmem:[%s5 + $0x70] sm:$0xff]
    %v920 = vld [vmem:[%s5 + $0x78] sm:$0xff]
    %v921 = vld [vmem:[%s5 + $0x80] sm:$0xff]
    %v922 = vld [vmem:[%s5 + $0x88] sm:$0xff]
    %v923 = vld [vmem:[%s5 + $0x90] sm:$0xff]
    %v924 = vld [vmem:[%s5 + $0x98] sm:$0xff]
    %v925 = vld [vmem:[%s5 + $0xa0] sm:$0xff]
    %v926 = vld [vmem:[%s5 + $0xa8] sm:$0xff]
    %v927 = vld [vmem:[%s5 + $0xb0] sm:$0xff]
    %v928 = vld [vmem:[%s5 + $0xb8] sm:$0xff]
    %v929 = vld [vmem:[%s5 + $0xc0] sm:$0xff]
    %v930 = vld [vmem:[%s5 + $0xc8] sm:$0xff]
    %v931 = vld [vmem:[%s5 + $0xd0] sm:$0xff]
    %v932 = vld [vmem:[%s5 + $0xd8] sm:$0xff]
    %v933 = vld [vmem:[%s5 + $0xe0] sm:$0xff]
    %v934 = vld [vmem:[%s5 + $0xe8] sm:$0xff]
    %v935 = vld [vmem:[%s5 + $0xf0] sm:$0xff]
    %v936 = vld [vmem:[%s5 + $0xf8] sm:$0xff]
    %v937 = vld [vmem:[%s6] sm:$0xff]
    %v939 = vlaneseq
    %v940 = vshrl.u32 %v939, 7
    %v941 = vsub.s32 0, %v940
    %v942 = vrot.slane %v937, %v941
    %v943 = vlaneseq
    %v944 = vshrl.u32 %v943, 7
    %v945 = vsub.s32 1, %v944
    %v946 = vrot.slane %v937, %v945
    %v947 = vlaneseq
    %v948 = vshrl.u32 %v947, 7
    %v949 = vsub.s32 2, %v948
    %v950 = vrot.slane %v937, %v949
    %v951 = vlaneseq
    %v952 = vshrl.u32 %v951, 7
    %v953 = vsub.s32 3, %v952
    %v954 = vrot.slane %v937, %v953
    %v955 = vlaneseq
    %v956 = vshrl.u32 %v955, 7
    %v957 = vsub.s32 4, %v956
    %v958 = vrot.slane %v937, %v957
    %v959 = vlaneseq
    %v960 = vshrl.u32 %v959, 7
    %v961 = vsub.s32 5, %v960
    %v962 = vrot.slane %v937, %v961
    %v963 = vlaneseq
    %v964 = vshrl.u32 %v963, 7
    %v965 = vsub.s32 6, %v964
    %v966 = vrot.slane %v937, %v965
    %v967 = vlaneseq
    %v968 = vshrl.u32 %v967, 7
    %v969 = vsub.s32 7, %v968
    %v970 = vrot.slane %v937, %v969
    %v980 = vsel %vm219, %v904, 0
    %982 = vmatprep.subr.mxu0 %v906
    %983 = vmatpush1.msra.mxu0 %v905
    %984 = vmatprep.subr.mxu0 %v914
    %985 = vmatpush1.msra.mxu0 %v913
    %986 = vmatprep.subr.mxu0 %v922
    %987 = vmatpush1.msra.mxu0 %v921
    %988 = vmatprep.subr.mxu0 %v930
    %989 = vmatpush1.msra.mxu0 %v929
    %990 = vmatprep.subr.mxu0 0.0
    %991 = vmatpush1.msra.mxu0 0.0
    %992 = vmatprep.subr.mxu0 0.0
    %993 = vmatpush1.msra.mxu0 0.0
    %994 = vmatprep.subr.mxu0 0.0
    %995 = vmatpush1.msra.mxu0 0.0
    %996 = vmatprep.subr.mxu0 0.0
    %997 = vmatpush1.msra.mxu0 0.0
    %998 = vmatprep.subr.mxu0 0.0
    %999 = vmatpush1.msra.mxu0 0.0
    %1000 = vmatprep.subr.mxu0 0.0
    %1001 = vmatpush1.msra.mxu0 0.0
    %1002 = vmatprep.subr.mxu0 0.0
    %1003 = vmatpush1.msra.mxu0 0.0
    %1004 = vmatprep.subr.mxu0 0.0
    %1005 = vmatpush1.msra.mxu0 0.0
    %1006 = vmatprep.subr.mxu0 0.0
    %1007 = vmatpush1.msra.mxu0 0.0
    %1008 = vmatprep.subr.mxu0 0.0
    %1009 = vmatpush1.msra.mxu0 0.0
    %1010 = vmatprep.subr.mxu0 0.0
    %1011 = vmatpush1.msra.mxu0 0.0
    %1012 = vmatprep.subr.mxu0 0.0
    %1013 = vmatpush1.msra.mxu0 0.0
    %1014 = vmatprep.subr.mxu0 0.0
    %1015 = vmatpush1.msra.mxu0 0.0
    %1016 = vmatprep.subr.mxu0 0.0
    %1017 = vmatpush1.msra.mxu0 0.0
    %1018 = vmatprep.subr.mxu0 0.0
    %1019 = vmatpush1.msra.mxu0 0.0
    %1020 = vmatprep.subr.mxu0 0.0
    %1021 = vmatpush1.msra.mxu0 0.0
    %1022 = vmatprep.subr.mxu0 0.0
    %1023 = vmatpush1.msra.mxu0 0.0
    %1024 = vmatprep.subr.mxu0 0.0
    %1025 = vmatpush1.msra.mxu0 0.0
    %1026 = vmatprep.subr.mxu0 0.0
    %1027 = vmatpush1.msra.mxu0 0.0
    %1028 = vmatprep.subr.mxu0 0.0
    %1029 = vmatpush1.msra.mxu0 0.0
    %1030 = vmatprep.subr.mxu0 0.0
    %1031 = vmatpush1.msra.mxu0 0.0
    %1032 = vmatprep.subr.mxu0 0.0
    %1033 = vmatpush1.msra.mxu0 0.0
    %1034 = vmatprep.subr.mxu0 0.0
    %1035 = vmatpush1.msra.mxu0 0.0
    %1036 = vmatprep.subr.mxu0 0.0
    %1037 = vmatpush1.msra.mxu0 0.0
    %1038 = vmatprep.subr.mxu0 0.0
    %1039 = vmatpush1.msra.mxu0 0.0
    %1040 = vmatprep.subr.mxu0 0.0
    %1041 = vmatpush1.msra.mxu0 0.0
    %1042 = vmatprep.subr.mxu0 0.0
    %1043 = vmatpush1.msra.mxu0 0.0
    %1044 = vmatprep.subr.mxu0 0.0
    %1045 = vmatpush1.msra.mxu0 0.0
    %1046 = vmatprep.mubr.f32.mxu0 0.0
    %1047 = vmatmul.mubr.f32.gmra.mrb[0].mxu0 %v980
    %v1048 = vpop.f32.mrb[0].mxu0
    %v1049 = vadd.f32 %v942, %v1048
    %v1050 = vpop.f32.mrb[0].mxu0
    %v1051 = vadd.f32 %v946, %v1050
    %1052 = vdwg.mxu0
    %1053 = vmatprep.subr.mxu0 %v908
    %1054 = vmatpush1.msra.mxu0 %v907
    %1055 = vmatprep.subr.mxu0 %v916
    %1056 = vmatpush1.msra.mxu0 %v915
    %1057 = vmatprep.subr.mxu0 %v924
    %1058 = vmatpush1.msra.mxu0 %v923
    %1059 = vmatprep.subr.mxu0 %v932
    %1060 = vmatpush1.msra.mxu0 %v931
    %1061 = vmatprep.subr.mxu0 0.0
    %1062 = vmatpush1.msra.mxu0 0.0
    %1063 = vmatprep.subr.mxu0 0.0
    %1064 = vmatpush1.msra.mxu0 0.0
    %1065 = vmatprep.subr.mxu0 0.0
    %1066 = vmatpush1.msra.mxu0 0.0
    %1067 = vmatprep.subr.mxu0 0.0
    %1068 = vmatpush1.msra.mxu0 0.0
    %1069 = vmatprep.subr.mxu0 0.0
    %1070 = vmatpush1.msra.mxu0 0.0
    %1071 = vmatprep.subr.mxu0 0.0
    %1072 = vmatpush1.msra.mxu0 0.0
    %1073 = vmatprep.subr.mxu0 0.0
    %1074 = vmatpush1.msra.mxu0 0.0
    %1075 = vmatprep.subr.mxu0 0.0
    %1076 = vmatpush1.msra.mxu0 0.0
    %1077 = vmatprep.subr.mxu0 0.0
    %1078 = vmatpush1.msra.mxu0 0.0
    %1079 = vmatprep.subr.mxu0 0.0
    %1080 = vmatpush1.msra.mxu0 0.0
    %1081 = vmatprep.subr.mxu0 0.0
    %1082 = vmatpush1.msra.mxu0 0.0
    %1083 = vmatprep.subr.mxu0 0.0
    %1084 = vmatpush1.msra.mxu0 0.0
    %1085 = vmatprep.subr.mxu0 0.0
    %1086 = vmatpush1.msra.mxu0 0.0
    %1087 = vmatprep.subr.mxu0 0.0
    %1088 = vmatpush1.msra.mxu0 0.0
    %1089 = vmatprep.subr.mxu0 0.0
    %1090 = vmatpush1.msra.mxu0 0.0
    %1091 = vmatprep.subr.mxu0 0.0
    %1092 = vmatpush1.msra.mxu0 0.0
    %1093 = vmatprep.subr.mxu0 0.0
    %1094 = vmatpush1.msra.mxu0 0.0
    %1095 = vmatprep.subr.mxu0 0.0
    %1096 = vmatpush1.msra.mxu0 0.0
    %1097 = vmatprep.subr.mxu0 0.0
    %1098 = vmatpush1.msra.mxu0 0.0
    %1099 = vmatprep.subr.mxu0 0.0
    %1100 = vmatpush1.msra.mxu0 0.0
    %1101 = vmatprep.subr.mxu0 0.0
    %1102 = vmatpush1.msra.mxu0 0.0
    %1103 = vmatprep.subr.mxu0 0.0
    %1104 = vmatpush1.msra.mxu0 0.0
    %1105 = vmatprep.subr.mxu0 0.0
    %1106 = vmatpush1.msra.mxu0 0.0
    %1107 = vmatprep.subr.mxu0 0.0
    %1108 = vmatpush1.msra.mxu0 0.0
    %1109 = vmatprep.subr.mxu0 0.0
    %1110 = vmatpush1.msra.mxu0 0.0
    %1111 = vmatprep.subr.mxu0 0.0
    %1112 = vmatpush1.msra.mxu0 0.0
    %1113 = vmatprep.subr.mxu0 0.0
    %1114 = vmatpush1.msra.mxu0 0.0
    %1115 = vmatprep.subr.mxu0 0.0
    %1116 = vmatpush1.msra.mxu0 0.0
    %1117 = vmatprep.mubr.f32.mxu0 0.0
    %1118 = vmatmul.mubr.f32.gmra.mrb[0].mxu0 %v980
    %v1119 = vpop.f32.mrb[0].mxu0
    %v1120 = vadd.f32 %v950, %v1119
    %v1121 = vpop.f32.mrb[0].mxu0
    %v1122 = vadd.f32 %v954, %v1121
    %1123 = vdwg.mxu0
    %1124 = vmatprep.subr.mxu0 %v910
    %1125 = vmatpush1.msra.mxu0 %v909
    %1126 = vmatprep.subr.mxu0 %v918
    %1127 = vmatpush1.msra.mxu0 %v917
    %1128 = vmatprep.subr.mxu0 %v926
    %1129 = vmatpush1.msra.mxu0 %v925
    %1130 = vmatprep.subr.mxu0 %v934
    %1131 = vmatpush1.msra.mxu0 %v933
    %1132 = vmatprep.subr.mxu0 0.0
    %1133 = vmatpush1.msra.mxu0 0.0
    %1134 = vmatprep.subr.mxu0 0.0
    %1135 = vmatpush1.msra.mxu0 0.0
    %1136 = vmatprep.subr.mxu0 0.0
    %1137 = vmatpush1.msra.mxu0 0.0
    %1138 = vmatprep.subr.mxu0 0.0
    %1139 = vmatpush1.msra.mxu0 0.0
    %1140 = vmatprep.subr.mxu0 0.0
    %1141 = vmatpush1.msra.mxu0 0.0
    %1142 = vmatprep.subr.mxu0 0.0
    %1143 = vmatpush1.msra.mxu0 0.0
    %1144 = vmatprep.subr.mxu0 0.0
    %1145 = vmatpush1.msra.mxu0 0.0
    %1146 = vmatprep.subr.mxu0 0.0
    %1147 = vmatpush1.msra.mxu0 0.0
    %1148 = vmatprep.subr.mxu0 0.0
    %1149 = vmatpush1.msra.mxu0 0.0
    %1150 = vmatprep.subr.mxu0 0.0
    %1151 = vmatpush1.msra.mxu0 0.0
    %1152 = vmatprep.subr.mxu0 0.0
    %1153 = vmatpush1.msra.mxu0 0.0
    %1154 = vmatprep.subr.mxu0 0.0
    %1155 = vmatpush1.msra.mxu0 0.0
    %1156 = vmatprep.subr.mxu0 0.0
    %1157 = vmatpush1.msra.mxu0 0.0
    %1158 = vmatprep.subr.mxu0 0.0
    %1159 = vmatpush1.msra.mxu0 0.0
    %1160 = vmatprep.subr.mxu0 0.0
    %1161 = vmatpush1.msra.mxu0 0.0
    %1162 = vmatprep.subr.mxu0 0.0
    %1163 = vmatpush1.msra.mxu0 0.0
    %1164 = vmatprep.subr.mxu0 0.0
    %1165 = vmatpush1.msra.mxu0 0.0
    %1166 = vmatprep.subr.mxu0 0.0
    %1167 = vmatpush1.msra.mxu0 0.0
    %1168 = vmatprep.subr.mxu0 0.0
    %1169 = vmatpush1.msra.mxu0 0.0
    %1170 = vmatprep.subr.mxu0 0.0
    %1171 = vmatpush1.msra.mxu0 0.0
    %1172 = vmatprep.subr.mxu0 0.0
    %1173 = vmatpush1.msra.mxu0 0.0
    %1174 = vmatprep.subr.mxu0 0.0
    %1175 = vmatpush1.msra.mxu0 0.0
    %1176 = vmatprep.subr.mxu0 0.0
    %1177 = vmatpush1.msra.mxu0 0.0
    %1178 = vmatprep.subr.mxu0 0.0
    %1179 = vmatpush1.msra.mxu0 0.0
    %1180 = vmatprep.subr.mxu0 0.0
    %1181 = vmatpush1.msra.mxu0 0.0
    %1182 = vmatprep.subr.mxu0 0.0
    %1183 = vmatpush1.msra.mxu0 0.0
    %1184 = vmatprep.subr.mxu0 0.0
    %1185 = vmatpush1.msra.mxu0 0.0
    %1186 = vmatprep.subr.mxu0 0.0
    %1187 = vmatpush1.msra.mxu0 0.0
    %1188 = vmatprep.mubr.f32.mxu0 0.0
    %1189 = vmatmul.mubr.f32.gmra.mrb[0].mxu0 %v980
    %v1190 = vpop.f32.mrb[0].mxu0
    %v1191 = vadd.f32 %v958, %v1190
    %v1192 = vpop.f32.mrb[0].mxu0
    %v1193 = vadd.f32 %v962, %v1192
    %1194 = vdwg.mxu0
    %1195 = vmatprep.subr.mxu0 %v912
    %1196 = vmatpush1.msra.mxu0 %v911
    %1197 = vmatprep.subr.mxu0 %v920
    %1198 = vmatpush1.msra.mxu0 %v919
    %1199 = vmatprep.subr.mxu0 %v928
    %1200 = vmatpush1.msra.mxu0 %v927
    %1201 = vmatprep.subr.mxu0 %v936
    %1202 = vmatpush1.msra.mxu0 %v935
    %1203 = vmatprep.subr.mxu0 0.0
    %1204 = vmatpush1.msra.mxu0 0.0
    %1205 = vmatprep.subr.mxu0 0.0
    %1206 = vmatpush1.msra.mxu0 0.0
    %1207 = vmatprep.subr.mxu0 0.0
    %1208 = vmatpush1.msra.mxu0 0.0
    %1209 = vmatprep.subr.mxu0 0.0
    %1210 = vmatpush1.msra.mxu0 0.0
    %1211 = vmatprep.subr.mxu0 0.0
    %1212 = vmatpush1.msra.mxu0 0.0
    %1213 = vmatprep.subr.mxu0 0.0
    %1214 = vmatpush1.msra.mxu0 0.0
    %1215 = vmatprep.subr.mxu0 0.0
    %1216 = vmatpush1.msra.mxu0 0.0
    %1217 = vmatprep.subr.mxu0 0.0
    %1218 = vmatpush1.msra.mxu0 0.0
    %1219 = vmatprep.subr.mxu0 0.0
    %1220 = vmatpush1.msra.mxu0 0.0
    %1221 = vmatprep.subr.mxu0 0.0
    %1222 = vmatpush1.msra.mxu0 0.0
    %1223 = vmatprep.subr.mxu0 0.0
    %1224 = vmatpush1.msra.mxu0 0.0
    %1225 = vmatprep.subr.mxu0 0.0
    %1226 = vmatpush1.msra.mxu0 0.0
    %1227 = vmatprep.subr.mxu0 0.0
    %1228 = vmatpush1.msra.mxu0 0.0
    %1229 = vmatprep.subr.mxu0 0.0
    %1230 = vmatpush1.msra.mxu0 0.0
    %1231 = vmatprep.subr.mxu0 0.0
    %1232 = vmatpush1.msra.mxu0 0.0
    %1233 = vmatprep.subr.mxu0 0.0
    %1234 = vmatpush1.msra.mxu0 0.0
    %1235 = vmatprep.subr.mxu0 0.0
    %1236 = vmatpush1.msra.mxu0 0.0
    %1237 = vmatprep.subr.mxu0 0.0
    %1238 = vmatpush1.msra.mxu0 0.0
    %1239 = vmatprep.subr.mxu0 0.0
    %1240 = vmatpush1.msra.mxu0 0.0
    %1241 = vmatprep.subr.mxu0 0.0
    %1242 = vmatpush1.msra.mxu0 0.0
    %1243 = vmatprep.subr.mxu0 0.0
    %1244 = vmatpush1.msra.mxu0 0.0
    %1245 = vmatprep.subr.mxu0 0.0
    %1246 = vmatpush1.msra.mxu0 0.0
    %1247 = vmatprep.subr.mxu0 0.0
    %1248 = vmatpush1.msra.mxu0 0.0
    %1249 = vmatprep.subr.mxu0 0.0
    %1250 = vmatpush1.msra.mxu0 0.0
    %1251 = vmatprep.subr.mxu0 0.0
    %1252 = vmatpush1.msra.mxu0 0.0
    %1253 = vmatprep.subr.mxu0 0.0
    %1254 = vmatpush1.msra.mxu0 0.0
    %1255 = vmatprep.subr.mxu0 0.0
    %1256 = vmatpush1.msra.mxu0 0.0
    %1257 = vmatprep.subr.mxu0 0.0
    %1258 = vmatpush1.msra.mxu0 0.0
    %1259 = vmatprep.mubr.f32.mxu0 0.0
    %1260 = vmatmul.mubr.f32.gmra.mrb[0].mxu0 %v980
    %v1261 = vpop.f32.mrb[0].mxu0
    %v1262 = vadd.f32 %v966, %v1261
    %v1263 = vpop.f32.mrb[0].mxu0
    %v1264 = vadd.f32 %v970, %v1263
    %1265 = vdwg.mxu0
    %1266 = vrot.lane.b32.xlu0 %v819, 32
    %v1267 = vpop.permute.xlu0 %1266
    %1269 = vrot.lane.b32.xlu0 %v819, 64
    %v1270 = vpop.permute.xlu0 %1269
    %1272 = vrot.lane.b32.xlu0 %v819, 96
    %v1273 = vpop.permute.xlu0 %1272
    %v1275 = vsel %vm219, %v819, %v1267
    %vm1276 = vcmask 523264
    %v1277 = vsel %vm1276, %v1275, %v1270
    %vm1278 = vcmask 785408
    %v1279 = vsel %vm1278, %v1277, %v1273
    %v1280 = vmul.f32 %v1049, %v1279
    %v1281 = vmul.f32 %v1051, %v1279
    %v1282 = vmul.f32 %v1120, %v1279
    %v1283 = vmul.f32 %v1122, %v1279
    %v1284 = vmul.f32 %v1191, %v1279
    %v1285 = vmul.f32 %v1193, %v1279
    %v1286 = vmul.f32 %v1262, %v1279
    %v1287 = vmul.f32 %v1264, %v1279
    %v1288 = vld [vmem:[%s7] sm:$0xff]
    %v1289 = vld [vmem:[%s7 + $0x8] sm:$0xff]
    %v1290 = vld [vmem:[%s7 + $0x10] sm:$0xff]
    %v1291 = vld [vmem:[%s7 + $0x18] sm:$0xff]
    %v1292 = vld [vmem:[%s7 + $0x20] sm:$0xff]
    %v1293 = vld [vmem:[%s7 + $0x28] sm:$0xff]
    %v1294 = vld [vmem:[%s7 + $0x30] sm:$0xff]
    %v1295 = vld [vmem:[%s7 + $0x38] sm:$0xff]
    %v1296 = vld [vmem:[%s7 + $0x40] sm:$0xff]
    %v1297 = vld [vmem:[%s7 + $0x48] sm:$0xff]
    %v1298 = vld [vmem:[%s7 + $0x50] sm:$0xff]
    %v1299 = vld [vmem:[%s7 + $0x58] sm:$0xff]
    %v1300 = vld [vmem:[%s7 + $0x60] sm:$0xff]
    %v1301 = vld [vmem:[%s7 + $0x68] sm:$0xff]
    %v1302 = vld [vmem:[%s7 + $0x70] sm:$0xff]
    %v1303 = vld [vmem:[%s7 + $0x78] sm:$0xff]
    %v1304 = vld [vmem:[%s7 + $0x80] sm:$0xff]
    %v1305 = vld [vmem:[%s7 + $0x88] sm:$0xff]
    %v1306 = vld [vmem:[%s7 + $0x90] sm:$0xff]
    %v1307 = vld [vmem:[%s7 + $0x98] sm:$0xff]
    %v1308 = vld [vmem:[%s7 + $0xa0] sm:$0xff]
    %v1309 = vld [vmem:[%s7 + $0xa8] sm:$0xff]
    %v1310 = vld [vmem:[%s7 + $0xb0] sm:$0xff]
    %v1311 = vld [vmem:[%s7 + $0xb8] sm:$0xff]
    %v1312 = vld [vmem:[%s7 + $0xc0] sm:$0xff]
    %v1313 = vld [vmem:[%s7 + $0xc8] sm:$0xff]
    %v1314 = vld [vmem:[%s7 + $0xd0] sm:$0xff]
    %v1315 = vld [vmem:[%s7 + $0xd8] sm:$0xff]
    %v1316 = vld [vmem:[%s7 + $0xe0] sm:$0xff]
    %v1317 = vld [vmem:[%s7 + $0xe8] sm:$0xff]
    %v1318 = vld [vmem:[%s7 + $0xf0] sm:$0xff]
    %v1319 = vld [vmem:[%s7 + $0xf8] sm:$0xff]
    %v1320 = vld [vmem:[%s7 + $0x100] sm:$0xff]
    %v1321 = vld [vmem:[%s7 + $0x108] sm:$0xff]
    %v1322 = vld [vmem:[%s7 + $0x110] sm:$0xff]
    %v1323 = vld [vmem:[%s7 + $0x118] sm:$0xff]
    %v1324 = vld [vmem:[%s7 + $0x120] sm:$0xff]
    %v1325 = vld [vmem:[%s7 + $0x128] sm:$0xff]
    %v1326 = vld [vmem:[%s7 + $0x130] sm:$0xff]
    %v1327 = vld [vmem:[%s7 + $0x138] sm:$0xff]
    %v1328 = vld [vmem:[%s7 + $0x140] sm:$0xff]
    %v1329 = vld [vmem:[%s7 + $0x148] sm:$0xff]
    %v1330 = vld [vmem:[%s7 + $0x150] sm:$0xff]
    %v1331 = vld [vmem:[%s7 + $0x158] sm:$0xff]
    %v1332 = vld [vmem:[%s7 + $0x160] sm:$0xff]
    %v1333 = vld [vmem:[%s7 + $0x168] sm:$0xff]
    %v1334 = vld [vmem:[%s7 + $0x170] sm:$0xff]
    %v1335 = vld [vmem:[%s7 + $0x178] sm:$0xff]
    %v1336 = vld [vmem:[%s7 + $0x180] sm:$0xff]
    %v1337 = vld [vmem:[%s7 + $0x188] sm:$0xff]
    %v1338 = vld [vmem:[%s7 + $0x190] sm:$0xff]
    %v1339 = vld [vmem:[%s7 + $0x198] sm:$0xff]
    %v1340 = vld [vmem:[%s7 + $0x1a0] sm:$0xff]
    %v1341 = vld [vmem:[%s7 + $0x1a8] sm:$0xff]
    %v1342 = vld [vmem:[%s7 + $0x1b0] sm:$0xff]
    %v1343 = vld [vmem:[%s7 + $0x1b8] sm:$0xff]
    %v1344 = vld [vmem:[%s7 + $0x1c0] sm:$0xff]
    %v1345 = vld [vmem:[%s7 + $0x1c8] sm:$0xff]
    %v1346 = vld [vmem:[%s7 + $0x1d0] sm:$0xff]
    %v1347 = vld [vmem:[%s7 + $0x1d8] sm:$0xff]
    %v1348 = vld [vmem:[%s7 + $0x1e0] sm:$0xff]
    %v1349 = vld [vmem:[%s7 + $0x1e8] sm:$0xff]
    %v1350 = vld [vmem:[%s7 + $0x1f0] sm:$0xff]
    %v1351 = vld [vmem:[%s7 + $0x1f8] sm:$0xff]
    %v1352 = vld [vmem:[%s7 + $0x200] sm:$0xff]
    %v1353 = vld [vmem:[%s7 + $0x208] sm:$0xff]
    %v1354 = vld [vmem:[%s7 + $0x210] sm:$0xff]
    %v1355 = vld [vmem:[%s7 + $0x218] sm:$0xff]
    %v1356 = vld [vmem:[%s7 + $0x220] sm:$0xff]
    %v1357 = vld [vmem:[%s7 + $0x228] sm:$0xff]
    %v1358 = vld [vmem:[%s7 + $0x230] sm:$0xff]
    %v1359 = vld [vmem:[%s7 + $0x238] sm:$0xff]
    %v1360 = vld [vmem:[%s7 + $0x240] sm:$0xff]
    %v1361 = vld [vmem:[%s7 + $0x248] sm:$0xff]
    %v1362 = vld [vmem:[%s7 + $0x250] sm:$0xff]
    %v1363 = vld [vmem:[%s7 + $0x258] sm:$0xff]
    %v1364 = vld [vmem:[%s7 + $0x260] sm:$0xff]
    %v1365 = vld [vmem:[%s7 + $0x268] sm:$0xff]
    %v1366 = vld [vmem:[%s7 + $0x270] sm:$0xff]
    %v1367 = vld [vmem:[%s7 + $0x278] sm:$0xff]
    %v1368 = vld [vmem:[%s7 + $0x280] sm:$0xff]
    %v1369 = vld [vmem:[%s7 + $0x288] sm:$0xff]
    %v1370 = vld [vmem:[%s7 + $0x290] sm:$0xff]
    %v1371 = vld [vmem:[%s7 + $0x298] sm:$0xff]
    %v1372 = vld [vmem:[%s7 + $0x2a0] sm:$0xff]
    %v1373 = vld [vmem:[%s7 + $0x2a8] sm:$0xff]
    %v1374 = vld [vmem:[%s7 + $0x2b0] sm:$0xff]
    %v1375 = vld [vmem:[%s7 + $0x2b8] sm:$0xff]
    %v1376 = vld [vmem:[%s7 + $0x2c0] sm:$0xff]
    %v1377 = vld [vmem:[%s7 + $0x2c8] sm:$0xff]
    %v1378 = vld [vmem:[%s7 + $0x2d0] sm:$0xff]
    %v1379 = vld [vmem:[%s7 + $0x2d8] sm:$0xff]
    %v1380 = vld [vmem:[%s7 + $0x2e0] sm:$0xff]
    %v1381 = vld [vmem:[%s7 + $0x2e8] sm:$0xff]
    %v1382 = vld [vmem:[%s7 + $0x2f0] sm:$0xff]
    %v1383 = vld [vmem:[%s7 + $0x2f8] sm:$0xff]
    %v1384 = vld [vmem:[%s7 + $0x300] sm:$0xff]
    %v1385 = vld [vmem:[%s7 + $0x308] sm:$0xff]
    %v1386 = vld [vmem:[%s7 + $0x310] sm:$0xff]
    %v1387 = vld [vmem:[%s7 + $0x318] sm:$0xff]
    %v1388 = vld [vmem:[%s7 + $0x320] sm:$0xff]
    %v1389 = vld [vmem:[%s7 + $0x328] sm:$0xff]
    %v1390 = vld [vmem:[%s7 + $0x330] sm:$0xff]
    %v1391 = vld [vmem:[%s7 + $0x338] sm:$0xff]
    %v1392 = vld [vmem:[%s7 + $0x340] sm:$0xff]
    %v1393 = vld [vmem:[%s7 + $0x348] sm:$0xff]
    %v1394 = vld [vmem:[%s7 + $0x350] sm:$0xff]
    %v1395 = vld [vmem:[%s7 + $0x358] sm:$0xff]
    %v1396 = vld [vmem:[%s7 + $0x360] sm:$0xff]
    %v1397 = vld [vmem:[%s7 + $0x368] sm:$0xff]
    %v1398 = vld [vmem:[%s7 + $0x370] sm:$0xff]
    %v1399 = vld [vmem:[%s7 + $0x378] sm:$0xff]
    %v1400 = vld [vmem:[%s7 + $0x380] sm:$0xff]
    %v1401 = vld [vmem:[%s7 + $0x388] sm:$0xff]
    %v1402 = vld [vmem:[%s7 + $0x390] sm:$0xff]
    %v1403 = vld [vmem:[%s7 + $0x398] sm:$0xff]
    %v1404 = vld [vmem:[%s7 + $0x3a0] sm:$0xff]
    %v1405 = vld [vmem:[%s7 + $0x3a8] sm:$0xff]
    %v1406 = vld [vmem:[%s7 + $0x3b0] sm:$0xff]
    %v1407 = vld [vmem:[%s7 + $0x3b8] sm:$0xff]
    %v1408 = vld [vmem:[%s7 + $0x3c0] sm:$0xff]
    %v1409 = vld [vmem:[%s7 + $0x3c8] sm:$0xff]
    %v1410 = vld [vmem:[%s7 + $0x3d0] sm:$0xff]
    %v1411 = vld [vmem:[%s7 + $0x3d8] sm:$0xff]
    %v1412 = vld [vmem:[%s7 + $0x3e0] sm:$0xff]
    %v1413 = vld [vmem:[%s7 + $0x3e8] sm:$0xff]
    %v1414 = vld [vmem:[%s7 + $0x3f0] sm:$0xff]
    %v1415 = vld [vmem:[%s7 + $0x3f8] sm:$0xff]
    %v1416 = vld [vmem:[%s8] sm:$0x1]
    %v1418 = vlaneseq
    %v1419 = vshrl.u32 %v1418, 7
    %v1420 = vsub.s32 0, %v1419
    %v1421 = vrot.slane %v1416, %v1420
    %1423 = vmatprep.subr.mxu0 0.0
    %1424 = vmatpush1.msra.mxu0 %v1288
    %1425 = vmatprep.subr.mxu0 0.0
    %1426 = vmatpush1.msra.mxu0 %v1289
    %1427 = vmatprep.subr.mxu0 0.0
    %1428 = vmatpush1.msra.mxu0 %v1290
    %1429 = vmatprep.subr.mxu0 0.0
    %1430 = vmatpush1.msra.mxu0 %v1291
    %1431 = vmatprep.subr.mxu0 0.0
    %1432 = vmatpush1.msra.mxu0 %v1292
    %1433 = vmatprep.subr.mxu0 0.0
    %1434 = vmatpush1.msra.mxu0 %v1293
    %1435 = vmatprep.subr.mxu0 0.0
    %1436 = vmatpush1.msra.mxu0 %v1294
    %1437 = vmatprep.subr.mxu0 0.0
    %1438 = vmatpush1.msra.mxu0 %v1295
    %1439 = vmatprep.subr.mxu0 0.0
    %1440 = vmatpush1.msra.mxu0 %v1296
    %1441 = vmatprep.subr.mxu0 0.0
    %1442 = vmatpush1.msra.mxu0 %v1297
    %1443 = vmatprep.subr.mxu0 0.0
    %1444 = vmatpush1.msra.mxu0 %v1298
    %1445 = vmatprep.subr.mxu0 0.0
    %1446 = vmatpush1.msra.mxu0 %v1299
    %1447 = vmatprep.subr.mxu0 0.0
    %1448 = vmatpush1.msra.mxu0 %v1300
    %1449 = vmatprep.subr.mxu0 0.0
    %1450 = vmatpush1.msra.mxu0 %v1301
    %1451 = vmatprep.subr.mxu0 0.0
    %1452 = vmatpush1.msra.mxu0 %v1302
    %1453 = vmatprep.subr.mxu0 0.0
    %1454 = vmatpush1.msra.mxu0 %v1303
    %1455 = vmatprep.subr.mxu0 0.0
    %1456 = vmatpush1.msra.mxu0 %v1304
    %1457 = vmatprep.subr.mxu0 0.0
    %1458 = vmatpush1.msra.mxu0 %v1305
    %1459 = vmatprep.subr.mxu0 0.0
    %1460 = vmatpush1.msra.mxu0 %v1306
    %1461 = vmatprep.subr.mxu0 0.0
    %1462 = vmatpush1.msra.mxu0 %v1307
    %1463 = vmatprep.subr.mxu0 0.0
    %1464 = vmatpush1.msra.mxu0 %v1308
    %1465 = vmatprep.subr.mxu0 0.0
    %1466 = vmatpush1.msra.mxu0 %v1309
    %1467 = vmatprep.subr.mxu0 0.0
    %1468 = vmatpush1.msra.mxu0 %v1310
    %1469 = vmatprep.subr.mxu0 0.0
    %1470 = vmatpush1.msra.mxu0 %v1311
    %1471 = vmatprep.subr.mxu0 0.0
    %1472 = vmatpush1.msra.mxu0 %v1312
    %1473 = vmatprep.subr.mxu0 0.0
    %1474 = vmatpush1.msra.mxu0 %v1313
    %1475 = vmatprep.subr.mxu0 0.0
    %1476 = vmatpush1.msra.mxu0 %v1314
    %1477 = vmatprep.subr.mxu0 0.0
    %1478 = vmatpush1.msra.mxu0 %v1315
    %1479 = vmatprep.subr.mxu0 0.0
    %1480 = vmatpush1.msra.mxu0 %v1316
    %1481 = vmatprep.subr.mxu0 0.0
    %1482 = vmatpush1.msra.mxu0 %v1317
    %1483 = vmatprep.subr.mxu0 0.0
    %1484 = vmatpush1.msra.mxu0 %v1318
    %1485 = vmatprep.subr.mxu0 0.0
    %1486 = vmatpush1.msra.mxu0 %v1319
    %1487 = vmatprep.mubr.f32.mxu0 %v1281
    %1488 = vmatmul.mubr.f32.gmra.mrb[0].mxu0 %v1280
    %v1489 = vpop.f32.mrb[0].mxu0
    %v1490 = vadd.f32 %v1421, %v1489
    %v1491 = vpop.f32.mrb[0].mxu0
    %1492 = vdwg.mxu0
    %1493 = vmatprep.subr.mxu0 0.0
    %1494 = vmatpush1.msra.mxu0 %v1320
    %1495 = vmatprep.subr.mxu0 0.0
    %1496 = vmatpush1.msra.mxu0 %v1321
    %1497 = vmatprep.subr.mxu0 0.0
    %1498 = vmatpush1.msra.mxu0 %v1322
    %1499 = vmatprep.subr.mxu0 0.0
    %1500 = vmatpush1.msra.mxu0 %v1323
    %1501 = vmatprep.subr.mxu0 0.0
    %1502 = vmatpush1.msra.mxu0 %v1324
    %1503 = vmatprep.subr.mxu0 0.0
    %1504 = vmatpush1.msra.mxu0 %v1325
    %1505 = vmatprep.subr.mxu0 0.0
    %1506 = vmatpush1.msra.mxu0 %v1326
    %1507 = vmatprep.subr.mxu0 0.0
    %1508 = vmatpush1.msra.mxu0 %v1327
    %1509 = vmatprep.subr.mxu0 0.0
    %1510 = vmatpush1.msra.mxu0 %v1328
    %1511 = vmatprep.subr.mxu0 0.0
    %1512 = vmatpush1.msra.mxu0 %v1329
    %1513 = vmatprep.subr.mxu0 0.0
    %1514 = vmatpush1.msra.mxu0 %v1330
    %1515 = vmatprep.subr.mxu0 0.0
    %1516 = vmatpush1.msra.mxu0 %v1331
    %1517 = vmatprep.subr.mxu0 0.0
    %1518 = vmatpush1.msra.mxu0 %v1332
    %1519 = vmatprep.subr.mxu0 0.0
    %1520 = vmatpush1.msra.mxu0 %v1333
    %1521 = vmatprep.subr.mxu0 0.0
    %1522 = vmatpush1.msra.mxu0 %v1334
    %1523 = vmatprep.subr.mxu0 0.0
    %1524 = vmatpush1.msra.mxu0 %v1335
    %1525 = vmatprep.subr.mxu0 0.0
    %1526 = vmatpush1.msra.mxu0 %v1336
    %1527 = vmatprep.subr.mxu0 0.0
    %1528 = vmatpush1.msra.mxu0 %v1337
    %1529 = vmatprep.subr.mxu0 0.0
    %1530 = vmatpush1.msra.mxu0 %v1338
    %1531 = vmatprep.subr.mxu0 0.0
    %1532 = vmatpush1.msra.mxu0 %v1339
    %1533 = vmatprep.subr.mxu0 0.0
    %1534 = vmatpush1.msra.mxu0 %v1340
    %1535 = vmatprep.subr.mxu0 0.0
    %1536 = vmatpush1.msra.mxu0 %v1341
    %1537 = vmatprep.subr.mxu0 0.0
    %1538 = vmatpush1.msra.mxu0 %v1342
    %1539 = vmatprep.subr.mxu0 0.0
    %1540 = vmatpush1.msra.mxu0 %v1343
    %1541 = vmatprep.subr.mxu0 0.0
    %1542 = vmatpush1.msra.mxu0 %v1344
    %1543 = vmatprep.subr.mxu0 0.0
    %1544 = vmatpush1.msra.mxu0 %v1345
    %1545 = vmatprep.subr.mxu0 0.0
    %1546 = vmatpush1.msra.mxu0 %v1346
    %1547 = vmatprep.subr.mxu0 0.0
    %1548 = vmatpush1.msra.mxu0 %v1347
    %1549 = vmatprep.subr.mxu0 0.0
    %1550 = vmatpush1.msra.mxu0 %v1348
    %1551 = vmatprep.subr.mxu0 0.0
    %1552 = vmatpush1.msra.mxu0 %v1349
    %1553 = vmatprep.subr.mxu0 0.0
    %1554 = vmatpush1.msra.mxu0 %v1350
    %1555 = vmatprep.subr.mxu0 0.0
    %1556 = vmatpush1.msra.mxu0 %v1351
    %1557 = vmatprep.mubr.f32.mxu0 %v1283
    %1558 = vmatmul.mubr.f32.gmra.mrb[0].mxu0 %v1282
    %v1559 = vpop.f32.mrb[0].mxu0
    %v1560 = vadd.f32 %v1490, %v1559
    %v1561 = vpop.f32.mrb[0].mxu0
    %1562 = vdwg.mxu0
    %1563 = vmatprep.subr.mxu0 0.0
    %1564 = vmatpush1.msra.mxu0 %v1352
    %1565 = vmatprep.subr.mxu0 0.0
    %1566 = vmatpush1.msra.mxu0 %v1353
    %1567 = vmatprep.subr.mxu0 0.0
    %1568 = vmatpush1.msra.mxu0 %v1354
    %1569 = vmatprep.subr.mxu0 0.0
    %1570 = vmatpush1.msra.mxu0 %v1355
    %1571 = vmatprep.subr.mxu0 0.0
    %1572 = vmatpush1.msra.mxu0 %v1356
    %1573 = vmatprep.subr.mxu0 0.0
    %1574 = vmatpush1.msra.mxu0 %v1357
    %1575 = vmatprep.subr.mxu0 0.0
    %1576 = vmatpush1.msra.mxu0 %v1358
    %1577 = vmatprep.subr.mxu0 0.0
    %1578 = vmatpush1.msra.mxu0 %v1359
    %1579 = vmatprep.subr.mxu0 0.0
    %1580 = vmatpush1.msra.mxu0 %v1360
    %1581 = vmatprep.subr.mxu0 0.0
    %1582 = vmatpush1.msra.mxu0 %v1361
    %1583 = vmatprep.subr.mxu0 0.0
    %1584 = vmatpush1.msra.mxu0 %v1362
    %1585 = vmatprep.subr.mxu0 0.0
    %1586 = vmatpush1.msra.mxu0 %v1363
    %1587 = vmatprep.subr.mxu0 0.0
    %1588 = vmatpush1.msra.mxu0 %v1364
    %1589 = vmatprep.subr.mxu0 0.0
    %1590 = vmatpush1.msra.mxu0 %v1365
    %1591 = vmatprep.subr.mxu0 0.0
    %1592 = vmatpush1.msra.mxu0 %v1366
    %1593 = vmatprep.subr.mxu0 0.0
    %1594 = vmatpush1.msra.mxu0 %v1367
    %1595 = vmatprep.subr.mxu0 0.0
    %1596 = vmatpush1.msra.mxu0 %v1368
    %1597 = vmatprep.subr.mxu0 0.0
    %1598 = vmatpush1.msra.mxu0 %v1369
    %1599 = vmatprep.subr.mxu0 0.0
    %1600 = vmatpush1.msra.mxu0 %v1370
    %1601 = vmatprep.subr.mxu0 0.0
    %1602 = vmatpush1.msra.mxu0 %v1371
    %1603 = vmatprep.subr.mxu0 0.0
    %1604 = vmatpush1.msra.mxu0 %v1372
    %1605 = vmatprep.subr.mxu0 0.0
    %1606 = vmatpush1.msra.mxu0 %v1373
    %1607 = vmatprep.subr.mxu0 0.0
    %1608 = vmatpush1.msra.mxu0 %v1374
    %1609 = vmatprep.subr.mxu0 0.0
    %1610 = vmatpush1.msra.mxu0 %v1375
    %1611 = vmatprep.subr.mxu0 0.0
    %1612 = vmatpush1.msra.mxu0 %v1376
    %1613 = vmatprep.subr.mxu0 0.0
    %1614 = vmatpush1.msra.mxu0 %v1377
    %1615 = vmatprep.subr.mxu0 0.0
    %1616 = vmatpush1.msra.mxu0 %v1378
    %1617 = vmatprep.subr.mxu0 0.0
    %1618 = vmatpush1.msra.mxu0 %v1379
    %1619 = vmatprep.subr.mxu0 0.0
    %1620 = vmatpush1.msra.mxu0 %v1380
    %1621 = vmatprep.subr.mxu0 0.0
    %1622 = vmatpush1.msra.mxu0 %v1381
    %1623 = vmatprep.subr.mxu0 0.0
    %1624 = vmatpush1.msra.mxu0 %v1382
    %1625 = vmatprep.subr.mxu0 0.0
    %1626 = vmatpush1.msra.mxu0 %v1383
    %1627 = vmatprep.mubr.f32.mxu0 %v1285
    %1628 = vmatmul.mubr.f32.gmra.mrb[0].mxu0 %v1284
    %v1629 = vpop.f32.mrb[0].mxu0
    %v1630 = vadd.f32 %v1560, %v1629
    %v1631 = vpop.f32.mrb[0].mxu0
    %1632 = vdwg.mxu0
    %1633 = vmatprep.subr.mxu0 0.0
    %1634 = vmatpush1.msra.mxu0 %v1384
    %1635 = vmatprep.subr.mxu0 0.0
    %1636 = vmatpush1.msra.mxu0 %v1385
    %1637 = vmatprep.subr.mxu0 0.0
    %1638 = vmatpush1.msra.mxu0 %v1386
    %1639 = vmatprep.subr.mxu0 0.0
    %1640 = vmatpush1.msra.mxu0 %v1387
    %1641 = vmatprep.subr.mxu0 0.0
    %1642 = vmatpush1.msra.mxu0 %v1388
    %1643 = vmatprep.subr.mxu0 0.0
    %1644 = vmatpush1.msra.mxu0 %v1389
    %1645 = vmatprep.subr.mxu0 0.0
    %1646 = vmatpush1.msra.mxu0 %v1390
    %1647 = vmatprep.subr.mxu0 0.0
    %1648 = vmatpush1.msra.mxu0 %v1391
    %1649 = vmatprep.subr.mxu0 0.0
    %1650 = vmatpush1.msra.mxu0 %v1392
    %1651 = vmatprep.subr.mxu0 0.0
    %1652 = vmatpush1.msra.mxu0 %v1393
    %1653 = vmatprep.subr.mxu0 0.0
    %1654 = vmatpush1.msra.mxu0 %v1394
    %1655 = vmatprep.subr.mxu0 0.0
    %1656 = vmatpush1.msra.mxu0 %v1395
    %1657 = vmatprep.subr.mxu0 0.0
    %1658 = vmatpush1.msra.mxu0 %v1396
    %1659 = vmatprep.subr.mxu0 0.0
    %1660 = vmatpush1.msra.mxu0 %v1397
    %1661 = vmatprep.subr.mxu0 0.0
    %1662 = vmatpush1.msra.mxu0 %v1398
    %1663 = vmatprep.subr.mxu0 0.0
    %1664 = vmatpush1.msra.mxu0 %v1399
    %1665 = vmatprep.subr.mxu0 0.0
    %1666 = vmatpush1.msra.mxu0 %v1400
    %1667 = vmatprep.subr.mxu0 0.0
    %1668 = vmatpush1.msra.mxu0 %v1401
    %1669 = vmatprep.subr.mxu0 0.0
    %1670 = vmatpush1.msra.mxu0 %v1402
    %1671 = vmatprep.subr.mxu0 0.0
    %1672 = vmatpush1.msra.mxu0 %v1403
    %1673 = vmatprep.subr.mxu0 0.0
    %1674 = vmatpush1.msra.mxu0 %v1404
    %1675 = vmatprep.subr.mxu0 0.0
    %1676 = vmatpush1.msra.mxu0 %v1405
    %1677 = vmatprep.subr.mxu0 0.0
    %1678 = vmatpush1.msra.mxu0 %v1406
    %1679 = vmatprep.subr.mxu0 0.0
    %1680 = vmatpush1.msra.mxu0 %v1407
    %1681 = vmatprep.subr.mxu0 0.0
    %1682 = vmatpush1.msra.mxu0 %v1408
    %1683 = vmatprep.subr.mxu0 0.0
    %1684 = vmatpush1.msra.mxu0 %v1409
    %1685 = vmatprep.subr.mxu0 0.0
    %1686 = vmatpush1.msra.mxu0 %v1410
    %1687 = vmatprep.subr.mxu0 0.0
    %1688 = vmatpush1.msra.mxu0 %v1411
    %1689 = vmatprep.subr.mxu0 0.0
    %1690 = vmatpush1.msra.mxu0 %v1412
    %1691 = vmatprep.subr.mxu0 0.0
    %1692 = vmatpush1.msra.mxu0 %v1413
    %1693 = vmatprep.subr.mxu0 0.0
    %1694 = vmatpush1.msra.mxu0 %v1414
    %1695 = vmatprep.subr.mxu0 0.0
    %1696 = vmatpush1.msra.mxu0 %v1415
    %1697 = vmatprep.mubr.f32.mxu0 %v1287
    %1698 = vmatmul.mubr.f32.gmra.mrb[0].mxu0 %v1286
    %v1699 = vpop.f32.mrb[0].mxu0
    %v1700 = vadd.f32 %v1630, %v1699
    %v1701 = vpop.f32.mrb[0].mxu0
    %1702 = vdwg.mxu0
    %1703 = vst.msk [vmem:[#allocation2] sm:$0xff] %vm85, %v1700
    // Predicated region
    $region38: #{tpu_custom_call.1} parent=1 // pred_check
      _
    $region39: #{tpu_custom_call.1} parent=1 // pred_check_branch
      %1705 = sbr.rel (0) target = $region41
    $region40: #{tpu_custom_call.1} parent=1 // pred_region
      %s1707 = ssub.s32 128, 128
      %1708 = vsyncadd [#allocation3], %s1707
      %s1710 = sshll.u32 [#allocation2], 4
      %s1711 = int_to_ptr.vmem [resolvable:$true] %s1710
      %1713 = dma.vmem_to_hbm [thread:$0]  %s1711, 128, %s9, [#allocation3]
    $region41: #{tpu_custom_call.1} parent=1 // pred_fallthru
      _
    // Predicated region
    $region42: #{tpu_custom_call.1} parent=1 // pred_check
      _
    $region43: #{tpu_custom_call.1} parent=1 // pred_check_branch
      %1715 = sbr.rel (0) target = $region45
    $region44: #{tpu_custom_call.1} parent=1 // pred_region
      %1716 = dma.done [#allocation3], 128
    $region45: #{tpu_custom_call.1} parent=1 // pred_fallthru
      _
    %1717 = vsyncpa [#allocation3], 1

</llo_original>
